<compile_context>
chip_gen: v7x
topology: tpu7x:2x2x1
jax: 0.10.0
libtpu: 0.0.40
codegen_flags: <defaults>
</compile_context>

<pallas_src>
import jax
import jax.numpy as jnp
from jax.experimental import pallas as pl
from jax.experimental.pallas import tpu as pltpu


# ----------------------------------------------------------------------------
# Pallas kernel: one grid step == one batch element, full (N, C) tiles in VMEM.
# ----------------------------------------------------------------------------
def transition_up_kernel(
    p1_ref,            # (1, N1, dim1)  coarse point features (f32)
    p2_ref,            # (1, N2, dim2)  fine point features (f32)
    x1t_ref,           # (1, 3, N1)     coarse xyz, coord-major (module's xyz1^T)
    x2_ref,            # (1, N2, 3)     fine xyz
    w1_ref, b1_ref,    # (dim1, C) bf16 (BN scale folded in), (1, C) f32
    w2_ref, b2_ref,    # (dim2, C) bf16 (BN scale folded in), (1, C) f32
    o_ref,             # (1, N2, C)
):
  x1t = x1t_ref[0]                   # (3, N1)
  x2 = x2_ref[0]                     # (N2, 3)
  N1 = x1t.shape[1]
  N2 = x2.shape[0]

  # ---- pairwise squared distances fine -> coarse, (N2, N1) ----------------
  # Direct squared-difference form (same op order as the reference): exact,
  # no cancellation-induced nearest-neighbor flips.  One-time cost, outside
  # the selection loop.
  def sq_diff(c):
    diff = x2[:, c:c + 1] - x1t[c:c + 1, :]        # (N2,1) - (1,N1) -> (N2,N1)
    return diff * diff

  d = sq_diff(0) + sq_diff(1) + sq_diff(2)         # (N2, N1) f32

  # ---- 3-NN inverse-distance weights as a sparse (N2, N1) matrix ----------
  # One XLU lane-reduce per iteration; sel = (d == dmin) is a single compare
  # and is one-hot per row for distinct distances (exact f32 ties have
  # ~zero probability with continuous coords).  Selected entries are knocked
  # out with +inf so they can never be re-selected.
  wmat = jnp.zeros((N2, N1), jnp.float32)
  rsum = jnp.zeros((N2, 1), jnp.float32)
  for _ in range(3):                                  # static, unrolled
    dmin = jnp.min(d, axis=-1, keepdims=True)         # (N2,1)  XLU reduce
    sel = d == dmin                                    # one-hot row mask
    r = pl.reciprocal(dmin + 1e-8, approx=True)        # (N2,1)  EUP
    wmat = jnp.where(sel, r, wmat)
    rsum = rsum + r
    d = jnp.where(sel, jnp.inf, d)
  wmat = wmat * pl.reciprocal(rsum, approx=True)       # row-normalize

  # ---- fc1 (Linear*BN-scale folded, + bias + ReLU), then interpolation ----
  # feats1 / feats2 are computed only now, after the selection loop, to keep
  # the loop's live set (d + wmat) within the 64-vreg file.
  feats1 = jnp.dot(p1_ref[0].astype(jnp.bfloat16), w1_ref[...],
                   preferred_element_type=jnp.float32)
  feats1 = jnp.maximum(feats1 + b1_ref[...], 0.0)                    # (N1, C)

  interp = jnp.dot(wmat.astype(jnp.bfloat16), feats1.astype(jnp.bfloat16),
                   preferred_element_type=jnp.float32)               # (N2, C)

  # ---- fc2 + residual add --------------------------------------------------
  feats2 = jnp.dot(p2_ref[0].astype(jnp.bfloat16), w2_ref[...],
                   preferred_element_type=jnp.float32)
  feats2 = jnp.maximum(feats2 + b2_ref[...], 0.0)                    # (N2, C)

  o_ref[0] = (interp + feats2).astype(o_ref.dtype)


# ----------------------------------------------------------------------------
# Wrapper
# ----------------------------------------------------------------------------
def transition_up(xyz1, points1, xyz2, points2, params):
  B, N1, dim1 = points1.shape
  _, N2, dim2 = points2.shape
  C = params["fc1_w"].shape[1]
  assert N1 >= 3, "PointNetFeaturePropagation S==1 repeat branch not implemented"

  # Mirrors the module's `xyz1.transpose(1, 2)` before feature propagation;
  # keeps the kernel free of XLU transposes and puts N1 on the lane axis.
  xyz1_t = jnp.swapaxes(xyz1, 1, 2)                    # (B, 3, N1)

  def const_spec(shape):
    nd = len(shape)
    return pl.BlockSpec(shape, lambda b, _nd=nd: (0,) * _nd)

  in_specs = [
      pl.BlockSpec((1, N1, dim1), lambda b: (b, 0, 0)),   # points1
      pl.BlockSpec((1, N2, dim2), lambda b: (b, 0, 0)),   # points2
      pl.BlockSpec((1, 3, N1), lambda b: (b, 0, 0)),      # xyz1 (coord-major)
      pl.BlockSpec((1, N2, 3), lambda b: (b, 0, 0)),      # xyz2
      const_spec((dim1, C)), const_spec((1, C)),          # fc1 (w folded, bias)
      const_spec((dim2, C)), const_spec((1, C)),          # fc2 (w folded, bias)
  ]

  return pl.pallas_call(
      transition_up_kernel,
      out_shape=jax.ShapeDtypeStruct((B, N2, C), points2.dtype),
      grid=(B,),
      in_specs=in_specs,
      out_specs=pl.BlockSpec((1, N2, C), lambda b: (b, 0, 0)),
      compiler_params=pltpu.CompilerParams(
          dimension_semantics=("parallel",)),
  )(
      points1, points2, xyz1_t, xyz2,
      params["fc1_w"], params["fc1_b"],
      params["fc2_w"], params["fc2_b"],
  )


# ----------------------------------------------------------------------------
# Deterministic synthetic parameters (module-style) + eval-mode BN folding
# ----------------------------------------------------------------------------
def init_params(key, dim1, dim2, dim_out):
  ks = iter(jax.random.split(key, 12))

  def layer(d_in):
    return {
        "w": 0.1 * jax.random.normal(next(ks), (d_in, dim_out), jnp.float32),
        "b": 0.1 * jax.random.normal(next(ks), (dim_out,), jnp.float32),
        "gamma": 1.0 + 0.1 * jax.random.normal(next(ks), (dim_out,), jnp.float32),
        "beta": 0.1 * jax.random.normal(next(ks), (dim_out,), jnp.float32),
        "mean": 0.1 * jax.random.normal(next(ks), (dim_out,), jnp.float32),
        "var": jnp.abs(jax.random.normal(next(ks), (dim_out,), jnp.float32)) + 0.5,
    }

  return {"fc1": layer(dim1), "fc2": layer(dim2)}


def fold_params(raw, eps=1e-5):
  # BN(Linear(x)) = x @ (W*s) + ((b - mean)*s + beta),  s = gamma/sqrt(var+eps)
  # BN scale is folded into the weight; the weight is stored in bf16 so the
  # kernel feeds the MXU at native rate.  Bias stays f32 (added post-acc).
  def fold(pr):
    s = pr["gamma"] * jax.lax.rsqrt(pr["var"] + eps)
    w_folded = (pr["w"] * s[None, :]).astype(jnp.bfloat16)
    bias = (pr["b"] - pr["mean"]) * s + pr["beta"]
    return w_folded, bias.reshape(1, -1).astype(jnp.float32)

  w1, b1 = fold(raw["fc1"])
  w2, b2 = fold(raw["fc2"])
  return {"fc1_w": w1, "fc1_b": b1, "fc2_w": w2, "fc2_b": b2}


# ----------------------------------------------------------------------------
# Pure-JAX reference (unfused math, exact reciprocals) for a sanity check
# ----------------------------------------------------------------------------
def transition_up_ref(xyz1, points1, xyz2, points2, raw, eps=1e-5):
  def fc(p, pr):
    y = p @ pr["w"] + pr["b"]
    y = (y - pr["mean"]) * pr["gamma"] * jax.lax.rsqrt(pr["var"] + eps) + pr["beta"]
    return jnp.maximum(y, 0.0)

  feats1 = fc(points1, raw["fc1"])                     # (B, N1, C)
  feats2 = fc(points2, raw["fc2"])                     # (B, N2, C)

  # 3-NN inverse-distance interpolation of feats1 onto the fine points.
  d = jnp.sum((xyz2[:, :, None, :] - xyz1[:, None, :, :]) ** 2, axis=-1)  # (B,N2,N1)
  neg_d, idx = jax.lax.top_k(-d, 3)                    # 3 smallest distances
  dists = -neg_d
  recip = 1.0 / (dists + 1e-8)
  w = recip / jnp.sum(recip, axis=-1, keepdims=True)   # (B, N2, 3)
  gathered = jax.vmap(lambda f, i: f[i])(feats1, idx)  # (B, N2, 3, C)
  interp = jnp.sum(gathered * w[..., None], axis=2)    # (B, N2, C)
  return interp + feats2


if __name__ == "__main__":
  B = 2
  N1, N2 = 128, 256            # coarse / fine point counts
  dim1, dim2, dim_out = 64, 64, 128   # dim_out = 128 -> lane-dense output

  key = jax.random.PRNGKey(0)
  k1, k2, k3, k4, kp = jax.random.split(key, 5)
  xyz1 = jax.random.normal(k1, (B, N1, 3), jnp.float32)
  points1 = jax.random.normal(k2, (B, N1, dim1), jnp.float32)
  xyz2 = jax.random.normal(k3, (B, N2, 3), jnp.float32)
  points2 = jax.random.normal(k4, (B, N2, dim2), jnp.float32)

  raw = init_params(kp, dim1, dim2, dim_out)
  params = fold_params(raw)

  out = jax.block_until_ready(transition_up(xyz1, points1, xyz2, points2, params))

  with jax.default_matmul_precision("highest"):
    ref = jax.block_until_ready(
        transition_up_ref(xyz1, points1, xyz2, points2, raw))

  err = float(jnp.max(jnp.abs(out - ref)))
  scale = float(jnp.max(jnp.abs(ref))) + 1e-6
  assert out.shape == (B, N2, dim_out)
  assert err / scale < 2e-2, f"mismatch: max abs err {err}, ref max {scale}"

  print("KERNEL_OK")
</pallas_src>

<mosaic_0001>
module attributes {stable_mosaic.version = 11 : i64} {
  func.func @transition_up_kernel(%arg0: i32, %arg1: memref<1x128x64xf32, #tpu.memory_space<vmem>>, %arg2: memref<1x256x64xf32, #tpu.memory_space<vmem>>, %arg3: memref<1x3x128xf32, #tpu.memory_space<vmem>>, %arg4: memref<1x256x3xf32, #tpu.memory_space<vmem>>, %arg5: memref<64x128xbf16, #tpu.memory_space<vmem>>, %arg6: memref<1x128xf32, #tpu.memory_space<vmem>>, %arg7: memref<64x128xbf16, #tpu.memory_space<vmem>>, %arg8: memref<1x128xf32, #tpu.memory_space<vmem>>, %arg9: memref<1x256x128xf32, #tpu.memory_space<vmem>>) attributes {dimension_semantics = [#tpu.dimension_semantics<parallel>], iteration_bounds = array<i64: 2>, scalar_prefetch = 0 : i64, scratch_operands = 0 : i64, tpu.core_type = #tpu.core_type<tc>, window_params = [{transform_indices = @transform_0, window_bounds = array<i64: 1, 128, 64>}, {transform_indices = @transform_1, window_bounds = array<i64: 1, 256, 64>}, {transform_indices = @transform_2, window_bounds = array<i64: 1, 3, 128>}, {transform_indices = @transform_3, window_bounds = array<i64: 1, 256, 3>}, {pipeline_mode = #tpu.pipeline_mode<synchronous>, transform_indices = @transform_4, window_bounds = array<i64: 64, 128>}, {pipeline_mode = #tpu.pipeline_mode<synchronous>, transform_indices = @transform_5, window_bounds = array<i64: 1, 128>}, {pipeline_mode = #tpu.pipeline_mode<synchronous>, transform_indices = @transform_6, window_bounds = array<i64: 64, 128>}, {pipeline_mode = #tpu.pipeline_mode<synchronous>, transform_indices = @transform_7, window_bounds = array<i64: 1, 128>}, {transform_indices = @transform_8, window_bounds = array<i64: 1, 256, 128>}]} {
    %c0 = arith.constant 0 : index
    %c0_0 = arith.constant 0 : index
    %c0_1 = arith.constant 0 : index
    %0 = vector.load %arg3[%c0, %c0_0, %c0_1] : memref<1x3x128xf32, #tpu.memory_space<vmem>>, vector<1x3x128xf32>
    %1 = vector.shape_cast %0 : vector<1x3x128xf32> to vector<3x128xf32>
    %c0_2 = arith.constant 0 : index
    %c0_3 = arith.constant 0 : index
    %c0_4 = arith.constant 0 : index
    %2 = vector.load %arg4[%c0_2, %c0_3, %c0_4] : memref<1x256x3xf32, #tpu.memory_space<vmem>>, vector<1x256x3xf32>
    %3 = vector.shape_cast %2 : vector<1x256x3xf32> to vector<256x3xf32>
    %4 = vector.extract_strided_slice %3 {offsets = [0, 0], sizes = [256, 1], strides = [1, 1]} : vector<256x3xf32> to vector<256x1xf32>
    %5 = vector.extract_strided_slice %1 {offsets = [0, 0], sizes = [1, 128], strides = [1, 1]} : vector<3x128xf32> to vector<1x128xf32>
    %6 = vector.broadcast %4 : vector<256x1xf32> to vector<256x128xf32>
    %7 = vector.broadcast %5 : vector<1x128xf32> to vector<256x128xf32>
    %8 = arith.subf %6, %7 : vector<256x128xf32>
    %9 = arith.mulf %8, %8 : vector<256x128xf32>
    %10 = vector.extract_strided_slice %3 {offsets = [0, 1], sizes = [256, 1], strides = [1, 1]} : vector<256x3xf32> to vector<256x1xf32>
    %11 = vector.extract_strided_slice %1 {offsets = [1, 0], sizes = [1, 128], strides = [1, 1]} : vector<3x128xf32> to vector<1x128xf32>
    %12 = vector.broadcast %10 : vector<256x1xf32> to vector<256x128xf32>
    %13 = vector.broadcast %11 : vector<1x128xf32> to vector<256x128xf32>
    %14 = arith.subf %12, %13 : vector<256x128xf32>
    %15 = arith.mulf %14, %14 : vector<256x128xf32>
    %16 = arith.addf %9, %15 : vector<256x128xf32>
    %17 = vector.extract_strided_slice %3 {offsets = [0, 2], sizes = [256, 1], strides = [1, 1]} : vector<256x3xf32> to vector<256x1xf32>
    %18 = vector.extract_strided_slice %1 {offsets = [2, 0], sizes = [1, 128], strides = [1, 1]} : vector<3x128xf32> to vector<1x128xf32>
    %19 = vector.broadcast %17 : vector<256x1xf32> to vector<256x128xf32>
    %20 = vector.broadcast %18 : vector<1x128xf32> to vector<256x128xf32>
    %21 = arith.subf %19, %20 : vector<256x128xf32>
    %22 = arith.mulf %21, %21 : vector<256x128xf32>
    %23 = arith.addf %16, %22 : vector<256x128xf32>
    %cst = arith.constant 0.000000e+00 : f32
    %24 = vector.broadcast %cst : f32 to vector<256x128xf32>
    %cst_5 = arith.constant 0.000000e+00 : f32
    %25 = vector.broadcast %cst_5 : f32 to vector<256x1xf32>
    %cst_6 = arith.constant dense<0x7F800000> : vector<256xf32>
    %26 = vector.multi_reduction <minimumf>, %23, %cst_6 [1] : vector<256x128xf32> to vector<256xf32>
    %27 = vector.shape_cast %26 : vector<256xf32> to vector<256x1xf32>
    %28 = vector.broadcast %27 : vector<256x1xf32> to vector<256x128xf32>
    %29 = arith.cmpf oeq, %23, %28 : vector<256x128xf32>
    %cst_7 = arith.constant 9.99999993E-9 : f32
    %30 = vector.broadcast %cst_7 : f32 to vector<256x1xf32>
    %31 = arith.addf %27, %30 : vector<256x1xf32>
    %32 = tpu.reciprocal %31 {approx = true} : vector<256x1xf32> -> vector<256x1xf32>
    %33 = vector.shape_cast %32 : vector<256x1xf32> to vector<256x1xf32>
    %34 = vector.broadcast %33 : vector<256x1xf32> to vector<256x128xf32>
    %35 = arith.select %29, %34, %24 : vector<256x128xi1>, vector<256x128xf32>
    %36 = arith.addf %25, %32 : vector<256x1xf32>
    %cst_8 = arith.constant 0x7F800000 : f32
    %37 = vector.broadcast %cst_8 : f32 to vector<256x128xf32>
    %38 = arith.select %29, %37, %23 : vector<256x128xi1>, vector<256x128xf32>
    %cst_9 = arith.constant dense<0x7F800000> : vector<256xf32>
    %39 = vector.multi_reduction <minimumf>, %38, %cst_9 [1] : vector<256x128xf32> to vector<256xf32>
    %40 = vector.shape_cast %39 : vector<256xf32> to vector<256x1xf32>
    %41 = vector.broadcast %40 : vector<256x1xf32> to vector<256x128xf32>
    %42 = arith.cmpf oeq, %38, %41 : vector<256x128xf32>
    %cst_10 = arith.constant 9.99999993E-9 : f32
    %43 = vector.broadcast %cst_10 : f32 to vector<256x1xf32>
    %44 = arith.addf %40, %43 : vector<256x1xf32>
    %45 = tpu.reciprocal %44 {approx = true} : vector<256x1xf32> -> vector<256x1xf32>
    %46 = vector.shape_cast %45 : vector<256x1xf32> to vector<256x1xf32>
    %47 = vector.broadcast %46 : vector<256x1xf32> to vector<256x128xf32>
    %48 = arith.select %42, %47, %35 : vector<256x128xi1>, vector<256x128xf32>
    %49 = arith.addf %36, %45 : vector<256x1xf32>
    %cst_11 = arith.constant 0x7F800000 : f32
    %50 = vector.broadcast %cst_11 : f32 to vector<256x128xf32>
    %51 = arith.select %42, %50, %38 : vector<256x128xi1>, vector<256x128xf32>
    %cst_12 = arith.constant dense<0x7F800000> : vector<256xf32>
    %52 = vector.multi_reduction <minimumf>, %51, %cst_12 [1] : vector<256x128xf32> to vector<256xf32>
    %53 = vector.shape_cast %52 : vector<256xf32> to vector<256x1xf32>
    %54 = vector.broadcast %53 : vector<256x1xf32> to vector<256x128xf32>
    %55 = arith.cmpf oeq, %51, %54 : vector<256x128xf32>
    %cst_13 = arith.constant 9.99999993E-9 : f32
    %56 = vector.broadcast %cst_13 : f32 to vector<256x1xf32>
    %57 = arith.addf %53, %56 : vector<256x1xf32>
    %58 = tpu.reciprocal %57 {approx = true} : vector<256x1xf32> -> vector<256x1xf32>
    %59 = vector.shape_cast %58 : vector<256x1xf32> to vector<256x1xf32>
    %60 = vector.broadcast %59 : vector<256x1xf32> to vector<256x128xf32>
    %61 = arith.select %55, %60, %48 : vector<256x128xi1>, vector<256x128xf32>
    %62 = arith.addf %49, %58 : vector<256x1xf32>
    %63 = tpu.reciprocal %62 {approx = true} : vector<256x1xf32> -> vector<256x1xf32>
    %64 = vector.broadcast %63 : vector<256x1xf32> to vector<256x128xf32>
    %65 = arith.mulf %61, %64 : vector<256x128xf32>
    %c0_14 = arith.constant 0 : index
    %c0_15 = arith.constant 0 : index
    %c0_16 = arith.constant 0 : index
    %66 = vector.load %arg1[%c0_14, %c0_15, %c0_16] : memref<1x128x64xf32, #tpu.memory_space<vmem>>, vector<1x128x64xf32>
    %67 = vector.shape_cast %66 : vector<1x128x64xf32> to vector<128x64xf32>
    %68 = arith.truncf %67 : vector<128x64xf32> to vector<128x64xbf16>
    %c0_17 = arith.constant 0 : index
    %c0_18 = arith.constant 0 : index
    %69 = vector.load %arg5[%c0_17, %c0_18] : memref<64x128xbf16, #tpu.memory_space<vmem>>, vector<64x128xbf16>
    %cst_19 = arith.constant dense<0.000000e+00> : vector<128x128xf32>
    %70 = tpu.matmul %68, %69, %cst_19 {dimension_numbers = #tpu.dot_dimension_numbers<[1], [0], [0], [1], [0, 0, 1, 1], [], []>} : vector<128x64xbf16>, vector<64x128xbf16>, vector<128x128xf32> -> vector<128x128xf32>
    %c0_20 = arith.constant 0 : index
    %c0_21 = arith.constant 0 : index
    %71 = vector.load %arg6[%c0_20, %c0_21] : memref<1x128xf32, #tpu.memory_space<vmem>>, vector<1x128xf32>
    %72 = vector.broadcast %71 : vector<1x128xf32> to vector<128x128xf32>
    %73 = arith.addf %70, %72 : vector<128x128xf32>
    %cst_22 = arith.constant 0.000000e+00 : f32
    %74 = vector.broadcast %cst_22 : f32 to vector<128x128xf32>
    %75 = arith.maximumf %73, %74 : vector<128x128xf32>
    %76 = arith.truncf %65 : vector<256x128xf32> to vector<256x128xbf16>
    %77 = arith.truncf %75 : vector<128x128xf32> to vector<128x128xbf16>
    %cst_23 = arith.constant dense<0.000000e+00> : vector<256x128xf32>
    %78 = tpu.matmul %76, %77, %cst_23 {dimension_numbers = #tpu.dot_dimension_numbers<[1], [0], [0], [1], [0, 0, 1, 1], [], []>} : vector<256x128xbf16>, vector<128x128xbf16>, vector<256x128xf32> -> vector<256x128xf32>
    %c0_24 = arith.constant 0 : index
    %c0_25 = arith.constant 0 : index
    %c0_26 = arith.constant 0 : index
    %79 = vector.load %arg2[%c0_24, %c0_25, %c0_26] : memref<1x256x64xf32, #tpu.memory_space<vmem>>, vector<1x256x64xf32>
    %80 = vector.shape_cast %79 : vector<1x256x64xf32> to vector<256x64xf32>
    %81 = arith.truncf %80 : vector<256x64xf32> to vector<256x64xbf16>
    %c0_27 = arith.constant 0 : index
    %c0_28 = arith.constant 0 : index
    %82 = vector.load %arg7[%c0_27, %c0_28] : memref<64x128xbf16, #tpu.memory_space<vmem>>, vector<64x128xbf16>
    %cst_29 = arith.constant dense<0.000000e+00> : vector<256x128xf32>
    %83 = tpu.matmul %81, %82, %cst_29 {dimension_numbers = #tpu.dot_dimension_numbers<[1], [0], [0], [1], [0, 0, 1, 1], [], []>} : vector<256x64xbf16>, vector<64x128xbf16>, vector<256x128xf32> -> vector<256x128xf32>
    %c0_30 = arith.constant 0 : index
    %c0_31 = arith.constant 0 : index
    %84 = vector.load %arg8[%c0_30, %c0_31] : memref<1x128xf32, #tpu.memory_space<vmem>>, vector<1x128xf32>
    %85 = vector.broadcast %84 : vector<1x128xf32> to vector<256x128xf32>
    %86 = arith.addf %83, %85 : vector<256x128xf32>
    %cst_32 = arith.constant 0.000000e+00 : f32
    %87 = vector.broadcast %cst_32 : f32 to vector<256x128xf32>
    %88 = arith.maximumf %86, %87 : vector<256x128xf32>
    %89 = arith.addf %78, %88 : vector<256x128xf32>
    %c0_33 = arith.constant 0 : index
    %c0_34 = arith.constant 0 : index
    %c0_35 = arith.constant 0 : index
    %90 = vector.load %arg9[%c0_33, %c0_34, %c0_35] : memref<1x256x128xf32, #tpu.memory_space<vmem>>, vector<1x256x128xf32>
    %91 = vector.shape_cast %90 : vector<1x256x128xf32> to vector<256x128xf32>
    %92 = vector.shape_cast %89 : vector<256x128xf32> to vector<1x256x128xf32>
    tpu.vector_store %arg9[%c0_33, %c0_34, %c0_35], %92 {strides = array<i32>} : memref<1x256x128xf32, #tpu.memory_space<vmem>>, vector<1x256x128xf32>,
    return
  }
  func.func @transform_0(%arg0: i32) -> (i32, i32, i32) {
    %c0_i32 = arith.constant 0 : i32
    %c0_i32_0 = arith.constant 0 : i32
    %c0_i32_1 = arith.constant 0 : i32
    return %arg0, %c0_i32, %c0_i32_0 : i32, i32, i32
  }
  func.func @transform_1(%arg0: i32) -> (i32, i32, i32) {
    %c0_i32 = arith.constant 0 : i32
    %c0_i32_0 = arith.constant 0 : i32
    %c0_i32_1 = arith.constant 0 : i32
    return %arg0, %c0_i32, %c0_i32_0 : i32, i32, i32
  }
  func.func @transform_2(%arg0: i32) -> (i32, i32, i32) {
    %c0_i32 = arith.constant 0 : i32
    %c0_i32_0 = arith.constant 0 : i32
    %c0_i32_1 = arith.constant 0 : i32
    return %arg0, %c0_i32, %c0_i32_0 : i32, i32, i32
  }
  func.func @transform_3(%arg0: i32) -> (i32, i32, i32) {
    %c0_i32 = arith.constant 0 : i32
    %c0_i32_0 = arith.constant 0 : i32
    %c0_i32_1 = arith.constant 0 : i32
    return %arg0, %c0_i32, %c0_i32_0 : i32, i32, i32
  }
  func.func @transform_4(%arg0: i32) -> (i32, i32) {
    %c0_i32 = arith.constant 0 : i32
    %c0_i32_0 = arith.constant 0 : i32
    %c0_i32_1 = arith.constant 0 : i32
    return %c0_i32, %c0_i32_0 : i32, i32
  }
  func.func @transform_5(%arg0: i32) -> (i32, i32) {
    %c0_i32 = arith.constant 0 : i32
    %c0_i32_0 = arith.constant 0 : i32
    %c0_i32_1 = arith.constant 0 : i32
    return %c0_i32, %c0_i32_0 : i32, i32
  }
  func.func @transform_6(%arg0: i32) -> (i32, i32) {
    %c0_i32 = arith.constant 0 : i32
    %c0_i32_0 = arith.constant 0 : i32
    %c0_i32_1 = arith.constant 0 : i32
    return %c0_i32, %c0_i32_0 : i32, i32
  }
  func.func @transform_7(%arg0: i32) -> (i32, i32) {
    %c0_i32 = arith.constant 0 : i32
    %c0_i32_0 = arith.constant 0 : i32
    %c0_i32_1 = arith.constant 0 : i32
    return %c0_i32, %c0_i32_0 : i32, i32
  }
  func.func @transform_8(%arg0: i32) -> (i32, i32, i32) {
    %c0_i32 = arith.constant 0 : i32
    %c0_i32_0 = arith.constant 0 : i32
    %c0_i32_1 = arith.constant 0 : i32
    return %arg0, %c0_i32, %c0_i32_0 : i32, i32, i32
  }
}

</mosaic_0001>

<llo_original>
// kernel: tpu_custom_call.1
$region0: #{tpu_custom_call.1}
  #allocation0 [shape = 'u32[]', space=smem, size = 0x4, offset = 0x4, fixed_abs, tag = 'smem constant byte address 0x4 - core index']
  #allocation1 [shape = 'u32[144,128]{1,0:T(1,128)}', space=vmem, size = 0x12000, scoped, tag = 'internal scratch']
  %s0 = inlined_call_operand.vmem [shape: f32[2,128,64], index: 0, kind: input, shape index: {}]
  %s1 = inlined_call_operand.vmem [shape: f32[2,256,64], index: 1, kind: input, shape index: {}]
  %s2 = inlined_call_operand.vmem [shape: f32[2,3,128], index: 2, kind: input, shape index: {}]
  %s3 = inlined_call_operand.vmem [shape: f32[2,256,3], index: 3, kind: input, shape index: {}]
  %s4 = inlined_call_operand.vmem [shape: bf16[64,128], index: 4, kind: input, shape index: {}]
  %s5 = inlined_call_operand.vmem [shape: f32[1,128], index: 5, kind: input, shape index: {}]
  %s6 = inlined_call_operand.vmem [shape: bf16[64,128], index: 6, kind: input, shape index: {}]
  %s7 = inlined_call_operand.vmem [shape: f32[1,128], index: 7, kind: input, shape index: {}]
  %s8 = inlined_call_operand.hbm [shape: f32[2,256,128], index: 8, kind: output, shape index: {}]
  %s9 = sld [smem:[#allocation0]]
  $region65: #{tpu_custom_call.1} parent=0
    _
  %s11 = ssub.s32 1, %s9
  %s12 = scalar_select 0, %s11, %s9
  $region1: #{tpu_custom_call.1} parent=0
    #allocation2 [shape = 'u8[262144]{0}', space=vmem, size = 0x40000, scoped, tag = 'output window, operand 0']
    #allocation3 [shape = 's32[2]{0}', space=sflag, size = 0x8, scoped, tag = 'scoped memory for tpu_custom_call.1']
    %13 = vsyncpa [#allocation3], 0
    %s14 = scalar_lea.sflag [#allocation3], 1
    %15 = vsyncpa %s14, 0
    loop: start=0, step=1, limit=4
    $region2: #{tpu_custom_call.1} parent=1 // loop_pre_header
      _
    $region3: #{tpu_custom_call.1} parent=1 // loop_header
      %s17 = sphi 0, %s21
      %p18 = scmp.ge.s32.totalorder %s17, 4
      %s27 = sphi 0, %s29
      %s30 = sphi 0, %s27
      %s31 = sphi 0, %s30
      %s47 = sphi 0, %s31
      %s53 = sphi 0, %s55
      %s56 = sphi 0, %s53
      %s57 = sphi 0, %s56
      %s73 = sphi 0, %s57
      %s79 = sphi 0, %s81
      %s82 = sphi 0, %s79
      %s83 = sphi 0, %s82
      %s99 = sphi 0, %s83
      %s105 = sphi 0, %s107
      %s108 = sphi 0, %s105
      %s109 = sphi 0, %s108
      %s125 = sphi 0, %s109
      %s129 = sphi 0, %s129
      %s131 = sphi 0, %s129
      %s132 = sphi 0, %s131
      %s146 = sphi 0, %s132
      %s150 = sphi 0, %s150
      %s152 = sphi 0, %s150
      %s153 = sphi 0, %s152
      %s167 = sphi 0, %s153
      %s171 = sphi 0, %s171
      %s173 = sphi 0, %s171
      %s174 = sphi 0, %s173
      %s188 = sphi 0, %s174
      %s192 = sphi 0, %s192
      %s194 = sphi 0, %s192
      %s195 = sphi 0, %s194
      %s209 = sphi 0, %s195
      %s215 = sphi 0, %s217
      %s218 = sphi 0, %s215
      %s219 = sphi 0, %s218
      %s235 = sphi 0, %s219
    $region4: #{tpu_custom_call.1} parent=1 // loop_header_branch
      %20 = sbr.rel (%p18) target = $region8
    $region5: #{tpu_custom_call.1} parent=1 // loop_body
      %s22 = ssub.s32 %s17, 1
      %s23 = ssub.s32 %s17, 2
      %s24 = sadd.s32 %s17, 1
      %s25 = ssub.s32 %s17, %s24
      %p26 = scmp.eq.s32.totalorder %s25, 0
      %s28 = sadd.s32 %s27, 1
      %s29 = scalar_select %p26, %s27, %s28
      %p32 = pneg %p26
      %p33 = scmp.eq.s32.totalorder %s17, 1
      %p34 = por %p32, %p33
      %p35 = scmp.ne.s32.totalorder %s27, %s30
      %p36 = scmp.eq.s32.totalorder %s17, 0
      %p37 = por %p35, %p36
      %p38 = scmp.ne.s32.totalorder %s27, %s30
      %p39 = scmp.eq.s32.totalorder %s22, 1
      %p40 = por %p38, %p39
      %p41 = scmp.ne.s32.totalorder %s30, %s31
      %p42 = scmp.eq.s32.totalorder %s22, 0
      %p43 = por %p41, %p42
      %p44 = scmp.ne.s32.totalorder %s30, %s31
      %p45 = scmp.eq.s32.totalorder %s23, 1
      %p46 = por %p44, %p45
      %p48 = scmp.ne.s32.totalorder %s31, %s47
      %p49 = scmp.eq.s32.totalorder %s23, 0
      %p50 = por %p48, %p49
      %s51 = ssub.s32 %s17, %s24
      %p52 = scmp.eq.s32.totalorder %s51, 0
      %s54 = sadd.s32 %s53, 1
      %s55 = scalar_select %p52, %s53, %s54
      %p58 = pneg %p52
      %p59 = scmp.eq.s32.totalorder %s17, 1
      %p60 = por %p58, %p59
      %p61 = scmp.ne.s32.totalorder %s53, %s56
      %p62 = scmp.eq.s32.totalorder %s17, 0
      %p63 = por %p61, %p62
      %p64 = scmp.ne.s32.totalorder %s53, %s56
      %p65 = scmp.eq.s32.totalorder %s22, 1
      %p66 = por %p64, %p65
      %p67 = scmp.ne.s32.totalorder %s56, %s57
      %p68 = scmp.eq.s32.totalorder %s22, 0
      %p69 = por %p67, %p68
      %p70 = scmp.ne.s32.totalorder %s56, %s57
      %p71 = scmp.eq.s32.totalorder %s23, 1
      %p72 = por %p70, %p71
      %p74 = scmp.ne.s32.totalorder %s57, %s73
      %p75 = scmp.eq.s32.totalorder %s23, 0
      %p76 = por %p74, %p75
      %s77 = ssub.s32 %s17, %s24
      %p78 = scmp.eq.s32.totalorder %s77, 0
      %s80 = sadd.s32 %s79, 1
      %s81 = scalar_select %p78, %s79, %s80
      %p84 = pneg %p78
      %p85 = scmp.eq.s32.totalorder %s17, 1
      %p86 = por %p84, %p85
      %p87 = scmp.ne.s32.totalorder %s79, %s82
      %p88 = scmp.eq.s32.totalorder %s17, 0
      %p89 = por %p87, %p88
      %p90 = scmp.ne.s32.totalorder %s79, %s82
      %p91 = scmp.eq.s32.totalorder %s22, 1
      %p92 = por %p90, %p91
      %p93 = scmp.ne.s32.totalorder %s82, %s83
      %p94 = scmp.eq.s32.totalorder %s22, 0
      %p95 = por %p93, %p94
      %p96 = scmp.ne.s32.totalorder %s82, %s83
      %p97 = scmp.eq.s32.totalorder %s23, 1
      %p98 = por %p96, %p97
      %p100 = scmp.ne.s32.totalorder %s83, %s99
      %p101 = scmp.eq.s32.totalorder %s23, 0
      %p102 = por %p100, %p101
      %s103 = ssub.s32 %s17, %s24
      %p104 = scmp.eq.s32.totalorder %s103, 0
      %s106 = sadd.s32 %s105, 1
      %s107 = scalar_select %p104, %s105, %s106
      %p110 = pneg %p104
      %p111 = scmp.eq.s32.totalorder %s17, 1
      %p112 = por %p110, %p111
      %p113 = scmp.ne.s32.totalorder %s105, %s108
      %p114 = scmp.eq.s32.totalorder %s17, 0
      %p115 = por %p113, %p114
      %p116 = scmp.ne.s32.totalorder %s105, %s108
      %p117 = scmp.eq.s32.totalorder %s22, 1
      %p118 = por %p116, %p117
      %p119 = scmp.ne.s32.totalorder %s108, %s109
      %p120 = scmp.eq.s32.totalorder %s22, 0
      %p121 = por %p119, %p120
      %p122 = scmp.ne.s32.totalorder %s108, %s109
      %p123 = scmp.eq.s32.totalorder %s23, 1
      %p124 = por %p122, %p123
      %p126 = scmp.ne.s32.totalorder %s109, %s125
      %p127 = scmp.eq.s32.totalorder %s23, 0
      %p128 = por %p126, %p127
      %s130 = sadd.s32 %s129, 1
      %p133 = scmp.eq.s32.totalorder %s17, 1
      %p134 = scmp.ne.s32.totalorder %s129, %s131
      %p135 = scmp.eq.s32.totalorder %s17, 0
      %p136 = por %p134, %p135
      %p137 = scmp.ne.s32.totalorder %s129, %s131
      %p138 = scmp.eq.s32.totalorder %s22, 1
      %p139 = por %p137, %p138
      %p140 = scmp.ne.s32.totalorder %s131, %s132
      %p141 = scmp.eq.s32.totalorder %s22, 0
      %p142 = por %p140, %p141
      %p143 = scmp.ne.s32.totalorder %s131, %s132
      %p144 = scmp.eq.s32.totalorder %s23, 1
      %p145 = por %p143, %p144
      %p147 = scmp.ne.s32.totalorder %s132, %s146
      %p148 = scmp.eq.s32.totalorder %s23, 0
      %p149 = por %p147, %p148
      %s151 = sadd.s32 %s150, 1
      %p154 = scmp.eq.s32.totalorder %s17, 1
      %p155 = scmp.ne.s32.totalorder %s150, %s152
      %p156 = scmp.eq.s32.totalorder %s17, 0
      %p157 = por %p155, %p156
      %p158 = scmp.ne.s32.totalorder %s150, %s152
      %p159 = scmp.eq.s32.totalorder %s22, 1
      %p160 = por %p158, %p159
      %p161 = scmp.ne.s32.totalorder %s152, %s153
      %p162 = scmp.eq.s32.totalorder %s22, 0
      %p163 = por %p161, %p162
      %p164 = scmp.ne.s32.totalorder %s152, %s153
      %p165 = scmp.eq.s32.totalorder %s23, 1
      %p166 = por %p164, %p165
      %p168 = scmp.ne.s32.totalorder %s153, %s167
      %p169 = scmp.eq.s32.totalorder %s23, 0
      %p170 = por %p168, %p169
      %s172 = sadd.s32 %s171, 1
      %p175 = scmp.eq.s32.totalorder %s17, 1
      %p176 = scmp.ne.s32.totalorder %s171, %s173
      %p177 = scmp.eq.s32.totalorder %s17, 0
      %p178 = por %p176, %p177
      %p179 = scmp.ne.s32.totalorder %s171, %s173
      %p180 = scmp.eq.s32.totalorder %s22, 1
      %p181 = por %p179, %p180
      %p182 = scmp.ne.s32.totalorder %s173, %s174
      %p183 = scmp.eq.s32.totalorder %s22, 0
      %p184 = por %p182, %p183
      %p185 = scmp.ne.s32.totalorder %s173, %s174
      %p186 = scmp.eq.s32.totalorder %s23, 1
      %p187 = por %p185, %p186
      %p189 = scmp.ne.s32.totalorder %s174, %s188
      %p190 = scmp.eq.s32.totalorder %s23, 0
      %p191 = por %p189, %p190
      %s193 = sadd.s32 %s192, 1
      %p196 = scmp.eq.s32.totalorder %s17, 1
      %p197 = scmp.ne.s32.totalorder %s192, %s194
      %p198 = scmp.eq.s32.totalorder %s17, 0
      %p199 = por %p197, %p198
      %p200 = scmp.ne.s32.totalorder %s192, %s194
      %p201 = scmp.eq.s32.totalorder %s22, 1
      %p202 = por %p200, %p201
      %p203 = scmp.ne.s32.totalorder %s194, %s195
      %p204 = scmp.eq.s32.totalorder %s22, 0
      %p205 = por %p203, %p204
      %p206 = scmp.ne.s32.totalorder %s194, %s195
      %p207 = scmp.eq.s32.totalorder %s23, 1
      %p208 = por %p206, %p207
      %p210 = scmp.ne.s32.totalorder %s195, %s209
      %p211 = scmp.eq.s32.totalorder %s23, 0
      %p212 = por %p210, %p211
      %s213 = ssub.s32 %s17, %s24
      %p214 = scmp.eq.s32.totalorder %s213, 0
      %s216 = sadd.s32 %s215, 1
      %s217 = scalar_select %p214, %s215, %s216
      %p220 = pneg %p214
      %p221 = scmp.eq.s32.totalorder %s17, 1
      %p222 = por %p220, %p221
      %p223 = scmp.ne.s32.totalorder %s215, %s218
      %p224 = scmp.eq.s32.totalorder %s17, 0
      %p225 = por %p223, %p224
      %p226 = scmp.ne.s32.totalorder %s215, %s218
      %p227 = scmp.eq.s32.totalorder %s22, 1
      %p228 = por %p226, %p227
      %p229 = scmp.ne.s32.totalorder %s218, %s219
      %p230 = scmp.eq.s32.totalorder %s22, 0
      %p231 = por %p229, %p230
      %p232 = scmp.ne.s32.totalorder %s218, %s219
      %p233 = scmp.eq.s32.totalorder %s23, 1
      %p234 = por %p232, %p233
      %p236 = scmp.ne.s32.totalorder %s219, %s235
      %p237 = scmp.eq.s32.totalorder %s23, 0
      %p238 = por %p236, %p237
      %p239 = scmp.le.s32.totalorder 1, %s17
      %p240 = scmp.lt.s32.totalorder %s17, 3
      %p241 = pnand %p239, %p240
      %p242 = pneg %p241
      // Predicated region
      $region9: #{tpu_custom_call.1} parent=5 // pred_check
        _
      $region10: #{tpu_custom_call.1} parent=5 // pred_check_branch
        %244 = sbr.rel (%p241) target = $region12
      $region11: #{tpu_custom_call.1} parent=5 // pred_region
        %s245 = ssub.s32 %s17, 1
        // Predicated region
        $region13: #{tpu_custom_call.1} parent=11 // pred_check
          %p246 = pneg %p142
        $region14: #{tpu_custom_call.1} parent=11 // pred_check_branch
          %248 = sbr.rel (%p246) target = $region16
        $region15: #{tpu_custom_call.1} parent=11 // pred_region
          _
        $region16: #{tpu_custom_call.1} parent=11 // pred_fallthru
          _
        // Predicated region
        $region17: #{tpu_custom_call.1} parent=11 // pred_check
          %p249 = pneg %p163
        $region18: #{tpu_custom_call.1} parent=11 // pred_check_branch
          %251 = sbr.rel (%p249) target = $region20
        $region19: #{tpu_custom_call.1} parent=11 // pred_region
          _
        $region20: #{tpu_custom_call.1} parent=11 // pred_fallthru
          _
        // Predicated region
        $region21: #{tpu_custom_call.1} parent=11 // pred_check
          %p252 = pneg %p184
        $region22: #{tpu_custom_call.1} parent=11 // pred_check_branch
          %254 = sbr.rel (%p252) target = $region24
        $region23: #{tpu_custom_call.1} parent=11 // pred_region
          _
        $region24: #{tpu_custom_call.1} parent=11 // pred_fallthru
          _
        // Predicated region
        $region25: #{tpu_custom_call.1} parent=11 // pred_check
          %p255 = pneg %p205
        $region26: #{tpu_custom_call.1} parent=11 // pred_check_branch
          %257 = sbr.rel (%p255) target = $region28
        $region27: #{tpu_custom_call.1} parent=11 // pred_region
          _
        $region28: #{tpu_custom_call.1} parent=11 // pred_fallthru
          _
      $region12: #{tpu_custom_call.1} parent=5 // pred_fallthru
        _
      %p258 = scmp.lt.s32.totalorder %s17, 2
      // Predicated region
      $region29: #{tpu_custom_call.1} parent=5 // pred_check
        %p259 = pneg %p258
      $region30: #{tpu_custom_call.1} parent=5 // pred_check_branch
        %261 = sbr.rel (%p259) target = $region32
      $region31: #{tpu_custom_call.1} parent=5 // pred_region
        // Predicated region
        $region33: #{tpu_custom_call.1} parent=31 // pred_check
          %p262 = pneg %p37
        $region34: #{tpu_custom_call.1} parent=31 // pred_check_branch
          %264 = sbr.rel (%p262) target = $region36
        $region35: #{tpu_custom_call.1} parent=31 // pred_region
          %p265 = scmp.lt.s32.totalorder %s17, 1
          %s266 = scalar_select %p265, %s17, 1
          %s267 = smul.addr %s266, 16
          %s268 = smul.addr %s267, 8
          %s269 = scalar_lea.vmem %s0, %s268
        $region36: #{tpu_custom_call.1} parent=31 // pred_fallthru
          _
        // Predicated region
        $region37: #{tpu_custom_call.1} parent=31 // pred_check
          %p270 = pneg %p63
        $region38: #{tpu_custom_call.1} parent=31 // pred_check_branch
          %272 = sbr.rel (%p270) target = $region40
        $region39: #{tpu_custom_call.1} parent=31 // pred_region
          %p273 = scmp.lt.s32.totalorder %s17, 1
          %s274 = scalar_select %p273, %s17, 1
          %s275 = smul.addr %s274, 32
          %s276 = smul.addr %s275, 8
          %s277 = scalar_lea.vmem %s1, %s276
        $region40: #{tpu_custom_call.1} parent=31 // pred_fallthru
          _
        // Predicated region
        $region41: #{tpu_custom_call.1} parent=31 // pred_check
          %p278 = pneg %p89
        $region42: #{tpu_custom_call.1} parent=31 // pred_check_branch
          %280 = sbr.rel (%p278) target = $region44
        $region43: #{tpu_custom_call.1} parent=31 // pred_region
          %p281 = scmp.lt.s32.totalorder %s17, 1
          %s282 = scalar_select %p281, %s17, 1
          %s283 = smul.addr %s282, 4
          %s284 = scalar_lea.vmem %s2, %s283
        $region44: #{tpu_custom_call.1} parent=31 // pred_fallthru
          _
        // Predicated region
        $region45: #{tpu_custom_call.1} parent=31 // pred_check
          %p285 = pneg %p115
        $region46: #{tpu_custom_call.1} parent=31 // pred_check_branch
          %287 = sbr.rel (%p285) target = $region48
        $region47: #{tpu_custom_call.1} parent=31 // pred_region
          %p288 = scmp.lt.s32.totalorder %s17, 1
          %s289 = scalar_select %p288, %s17, 1
          %s290 = smul.addr %s289, 32
          %s291 = smul.addr %s290, 8
          %s292 = scalar_lea.vmem %s3, %s291
        $region48: #{tpu_custom_call.1} parent=31 // pred_fallthru
          _
      $region32: #{tpu_custom_call.1} parent=5 // pred_fallthru
        _
      %p293 = scmp.le.s32.totalorder 1, %s17
      %p294 = scmp.lt.s32.totalorder %s17, 3
      %p295 = pnand %p293, %p294
      %p296 = pneg %p295
      // Predicated region
      $region49: #{tpu_custom_call.1} parent=5 // pred_check
        _
      $region50: #{tpu_custom_call.1} parent=5 // pred_check_branch
        %298 = sbr.rel (%p295) target = $region52
      $region51: #{tpu_custom_call.1} parent=5 // pred_region
        %s299 = ssub.s32 %s17, 1
        %p300 = scmp.lt.s32.totalorder %s22, 1
        %s301 = scalar_select %p300, %s22, 1
        %s302 = smul.addr %s301, 16
        %s303 = smul.addr %s302, 8
        %s304 = scalar_lea.vmem %s0, %s303
        %p305 = pneg %p43
        %p306 = pneg %p40
        %p307 = scmp.lt.s32.totalorder %s22, 1
        %s308 = scalar_select %p307, %s22, 1
        %s309 = smul.addr %s308, 32
        %s310 = smul.addr %s309, 8
        %s311 = scalar_lea.vmem %s1, %s310
        %p312 = pneg %p69
        %p313 = pneg %p66
        %p314 = scmp.lt.s32.totalorder %s22, 1
        %s315 = scalar_select %p314, %s22, 1
        %s316 = smul.addr %s315, 4
        %s317 = scalar_lea.vmem %s2, %s316
        %p318 = pneg %p95
        %p319 = pneg %p92
        %p320 = scmp.lt.s32.totalorder %s22, 1
        %s321 = scalar_select %p320, %s22, 1
        %s322 = smul.addr %s321, 32
        %s323 = smul.addr %s322, 8
        %s324 = scalar_lea.vmem %s3, %s323
        %p325 = pneg %p121
        %p326 = pneg %p118
        %p327 = pneg %p142
        %p328 = pneg %p139
        %p329 = pneg %p163
        %p330 = pneg %p160
        %p331 = pneg %p184
        %p332 = pneg %p181
        %p333 = pneg %p205
        %p334 = pneg %p202
        %p335 = pneg %p231
        %p336 = pneg %p228
        %s337 = sand.u32 %s218, 1
        %s338 = scalar_lea.sflag [#allocation3], %s337
        %s339 = sand.u32 %s218, 1
        %s340 = smul.addr %s339, 256
        %s341 = scalar_lea.vmem [#allocation2], %s340
        %p342 = scmp.lt.s32.totalorder %s22, 1
        %s343 = scalar_select %p342, %s22, 1
        %s344 = smul.addr %s343, 16
        %s345 = smul.addr %s344, 8
        %s346 = scalar_lea.vmem %s0, %s345
        %p347 = scmp.lt.s32.totalorder %s22, 1
        %s348 = scalar_select %p347, %s22, 1
        %s349 = smul.addr %s348, 32
        %s350 = smul.addr %s349, 8
        %s351 = scalar_lea.vmem %s1, %s350
        %p352 = scmp.lt.s32.totalorder %s22, 1
        %s353 = scalar_select %p352, %s22, 1
        %s354 = smul.addr %s353, 4
        %s355 = scalar_lea.vmem %s2, %s354
        %p356 = scmp.lt.s32.totalorder %s22, 1
        %s357 = scalar_select %p356, %s22, 1
        %s358 = smul.addr %s357, 32
        %s359 = smul.addr %s358, 8
        %s360 = scalar_lea.vmem %s3, %s359
        %v362 = vld [vmem:[%s355] sm:$0x7]
        %v363 = vld [vmem:[%s360] sm:$0xff]
        %v364 = vld [vmem:[%s360 + $0x8] sm:$0xff]
        %v365 = vld [vmem:[%s360 + $0x10] sm:$0xff]
        %v366 = vld [vmem:[%s360 + $0x18] sm:$0xff]
        %v367 = vld [vmem:[%s360 + $0x20] sm:$0xff]
        %v368 = vld [vmem:[%s360 + $0x28] sm:$0xff]
        %v369 = vld [vmem:[%s360 + $0x30] sm:$0xff]
        %v370 = vld [vmem:[%s360 + $0x38] sm:$0xff]
        %v371 = vld [vmem:[%s360 + $0x40] sm:$0xff]
        %v372 = vld [vmem:[%s360 + $0x48] sm:$0xff]
        %v373 = vld [vmem:[%s360 + $0x50] sm:$0xff]
        %v374 = vld [vmem:[%s360 + $0x58] sm:$0xff]
        %v375 = vld [vmem:[%s360 + $0x60] sm:$0xff]
        %v376 = vld [vmem:[%s360 + $0x68] sm:$0xff]
        %v377 = vld [vmem:[%s360 + $0x70] sm:$0xff]
        %v378 = vld [vmem:[%s360 + $0x78] sm:$0xff]
        %v379 = vld [vmem:[%s360 + $0x80] sm:$0xff]
        %v380 = vld [vmem:[%s360 + $0x88] sm:$0xff]
        %v381 = vld [vmem:[%s360 + $0x90] sm:$0xff]
        %v382 = vld [vmem:[%s360 + $0x98] sm:$0xff]
        %v383 = vld [vmem:[%s360 + $0xa0] sm:$0xff]
        %v384 = vld [vmem:[%s360 + $0xa8] sm:$0xff]
        %v385 = vld [vmem:[%s360 + $0xb0] sm:$0xff]
        %v386 = vld [vmem:[%s360 + $0xb8] sm:$0xff]
        %v387 = vld [vmem:[%s360 + $0xc0] sm:$0xff]
        %v388 = vld [vmem:[%s360 + $0xc8] sm:$0xff]
        %v389 = vld [vmem:[%s360 + $0xd0] sm:$0xff]
        %v390 = vld [vmem:[%s360 + $0xd8] sm:$0xff]
        %v391 = vld [vmem:[%s360 + $0xe0] sm:$0xff]
        %v392 = vld [vmem:[%s360 + $0xe8] sm:$0xff]
        %v393 = vld [vmem:[%s360 + $0xf0] sm:$0xff]
        %v394 = vld [vmem:[%s360 + $0xf8] sm:$0xff]
        %396 = vset.pattern.permute.xlu0 0
        %397 = vperm.xlu0 %396, %v363
        %v398 = vpop.permute.xlu0 %397
        %401 = vset.pattern.permute.xlu0 0
        %402 = vperm.xlu0 %401, %v364
        %v403 = vpop.permute.xlu0 %402
        %406 = vset.pattern.permute.xlu0 0
        %407 = vperm.xlu0 %406, %v365
        %v408 = vpop.permute.xlu0 %407
        %411 = vset.pattern.permute.xlu0 0
        %412 = vperm.xlu0 %411, %v366
        %v413 = vpop.permute.xlu0 %412
        %416 = vset.pattern.permute.xlu0 0
        %417 = vperm.xlu0 %416, %v367
        %v418 = vpop.permute.xlu0 %417
        %421 = vset.pattern.permute.xlu0 0
        %422 = vperm.xlu0 %421, %v368
        %v423 = vpop.permute.xlu0 %422
        %426 = vset.pattern.permute.xlu0 0
        %427 = vperm.xlu0 %426, %v369
        %v428 = vpop.permute.xlu0 %427
        %431 = vset.pattern.permute.xlu0 0
        %432 = vperm.xlu0 %431, %v370
        %v433 = vpop.permute.xlu0 %432
        %436 = vset.pattern.permute.xlu0 0
        %437 = vperm.xlu0 %436, %v371
        %v438 = vpop.permute.xlu0 %437
        %441 = vset.pattern.permute.xlu0 0
        %442 = vperm.xlu0 %441, %v372
        %v443 = vpop.permute.xlu0 %442
        %446 = vset.pattern.permute.xlu0 0
        %447 = vperm.xlu0 %446, %v373
        %v448 = vpop.permute.xlu0 %447
        %451 = vset.pattern.permute.xlu0 0
        %452 = vperm.xlu0 %451, %v374
        %v453 = vpop.permute.xlu0 %452
        %456 = vset.pattern.permute.xlu0 0
        %457 = vperm.xlu0 %456, %v375
        %v458 = vpop.permute.xlu0 %457
        %461 = vset.pattern.permute.xlu0 0
        %462 = vperm.xlu0 %461, %v376
        %v463 = vpop.permute.xlu0 %462
        %466 = vset.pattern.permute.xlu0 0
        %467 = vperm.xlu0 %466, %v377
        %v468 = vpop.permute.xlu0 %467
        %471 = vset.pattern.permute.xlu0 0
        %472 = vperm.xlu0 %471, %v378
        %v473 = vpop.permute.xlu0 %472
        %476 = vset.pattern.permute.xlu0 0
        %477 = vperm.xlu0 %476, %v379
        %v478 = vpop.permute.xlu0 %477
        %481 = vset.pattern.permute.xlu0 0
        %482 = vperm.xlu0 %481, %v380
        %v483 = vpop.permute.xlu0 %482
        %486 = vset.pattern.permute.xlu0 0
        %487 = vperm.xlu0 %486, %v381
        %v488 = vpop.permute.xlu0 %487
        %491 = vset.pattern.permute.xlu0 0
        %492 = vperm.xlu0 %491, %v382
        %v493 = vpop.permute.xlu0 %492
        %496 = vset.pattern.permute.xlu0 0
        %497 = vperm.xlu0 %496, %v383
        %v498 = vpop.permute.xlu0 %497
        %501 = vset.pattern.permute.xlu0 0
        %502 = vperm.xlu0 %501, %v384
        %v503 = vpop.permute.xlu0 %502
        %506 = vset.pattern.permute.xlu0 0
        %507 = vperm.xlu0 %506, %v385
        %v508 = vpop.permute.xlu0 %507
        %511 = vset.pattern.permute.xlu0 0
        %512 = vperm.xlu0 %511, %v386
        %v513 = vpop.permute.xlu0 %512
        %516 = vset.pattern.permute.xlu0 0
        %517 = vperm.xlu0 %516, %v387
        %v518 = vpop.permute.xlu0 %517
        %521 = vset.pattern.permute.xlu0 0
        %522 = vperm.xlu0 %521, %v388
        %v523 = vpop.permute.xlu0 %522
        %526 = vset.pattern.permute.xlu0 0
        %527 = vperm.xlu0 %526, %v389
        %v528 = vpop.permute.xlu0 %527
        %531 = vset.pattern.permute.xlu0 0
        %532 = vperm.xlu0 %531, %v390
        %v533 = vpop.permute.xlu0 %532
        %536 = vset.pattern.permute.xlu0 0
        %537 = vperm.xlu0 %536, %v391
        %v538 = vpop.permute.xlu0 %537
        %541 = vset.pattern.permute.xlu0 0
        %542 = vperm.xlu0 %541, %v392
        %v543 = vpop.permute.xlu0 %542
        %546 = vset.pattern.permute.xlu0 0
        %547 = vperm.xlu0 %546, %v393
        %v548 = vpop.permute.xlu0 %547
        %551 = vset.pattern.permute.xlu0 0
        %552 = vperm.xlu0 %551, %v394
        %v553 = vpop.permute.xlu0 %552
        %v555 = vlaneseq
        %v556 = vshrl.u32 %v555, 7
        %v557 = vsub.s32 0, %v556
        %v558 = vrot.slane %v362, %v557
        %v559 = vsub.f32 %v398, %v558
        %v560 = vsub.f32 %v403, %v558
        %v561 = vsub.f32 %v408, %v558
        %v562 = vsub.f32 %v413, %v558
        %v563 = vsub.f32 %v418, %v558
        %v564 = vsub.f32 %v423, %v558
        %v565 = vsub.f32 %v428, %v558
        %v566 = vsub.f32 %v433, %v558
        %v567 = vsub.f32 %v438, %v558
        %v568 = vsub.f32 %v443, %v558
        %v569 = vsub.f32 %v448, %v558
        %v570 = vsub.f32 %v453, %v558
        %v571 = vsub.f32 %v458, %v558
        %v572 = vsub.f32 %v463, %v558
        %v573 = vsub.f32 %v468, %v558
        %v574 = vsub.f32 %v473, %v558
        %v575 = vsub.f32 %v478, %v558
        %v576 = vsub.f32 %v483, %v558
        %v577 = vsub.f32 %v488, %v558
        %v578 = vsub.f32 %v493, %v558
        %v579 = vsub.f32 %v498, %v558
        %v580 = vsub.f32 %v503, %v558
        %v581 = vsub.f32 %v508, %v558
        %v582 = vsub.f32 %v513, %v558
        %v583 = vsub.f32 %v518, %v558
        %v584 = vsub.f32 %v523, %v558
        %v585 = vsub.f32 %v528, %v558
        %v586 = vsub.f32 %v533, %v558
        %v587 = vsub.f32 %v538, %v558
        %v588 = vsub.f32 %v543, %v558
        %v589 = vsub.f32 %v548, %v558
        %v590 = vsub.f32 %v553, %v558
        %v591 = vmul.f32 %v559, %v559
        %v592 = vmul.f32 %v560, %v560
        %v593 = vmul.f32 %v561, %v561
        %v594 = vmul.f32 %v562, %v562
        %v595 = vmul.f32 %v563, %v563
        %v596 = vmul.f32 %v564, %v564
        %v597 = vmul.f32 %v565, %v565
        %v598 = vmul.f32 %v566, %v566
        %v599 = vmul.f32 %v567, %v567
        %v600 = vmul.f32 %v568, %v568
        %v601 = vmul.f32 %v569, %v569
        %v602 = vmul.f32 %v570, %v570
        %v603 = vmul.f32 %v571, %v571
        %v604 = vmul.f32 %v572, %v572
        %v605 = vmul.f32 %v573, %v573
        %v606 = vmul.f32 %v574, %v574
        %v607 = vmul.f32 %v575, %v575
        %v608 = vmul.f32 %v576, %v576
        %v609 = vmul.f32 %v577, %v577
        %v610 = vmul.f32 %v578, %v578
        %v611 = vmul.f32 %v579, %v579
        %v612 = vmul.f32 %v580, %v580
        %v613 = vmul.f32 %v581, %v581
        %v614 = vmul.f32 %v582, %v582
        %v615 = vmul.f32 %v583, %v583
        %v616 = vmul.f32 %v584, %v584
        %v617 = vmul.f32 %v585, %v585
        %v618 = vmul.f32 %v586, %v586
        %v619 = vmul.f32 %v587, %v587
        %v620 = vmul.f32 %v588, %v588
        %v621 = vmul.f32 %v589, %v589
        %v622 = vmul.f32 %v590, %v590
        %623 = vset.pattern.permute.xlu0 1
        %624 = vperm.xlu0 %623, %v363
        %v625 = vpop.permute.xlu0 %624
        %627 = vset.pattern.permute.xlu0 1
        %628 = vperm.xlu0 %627, %v364
        %v629 = vpop.permute.xlu0 %628
        %631 = vset.pattern.permute.xlu0 1
        %632 = vperm.xlu0 %631, %v365
        %v633 = vpop.permute.xlu0 %632
        %635 = vset.pattern.permute.xlu0 1
        %636 = vperm.xlu0 %635, %v366
        %v637 = vpop.permute.xlu0 %636
        %639 = vset.pattern.permute.xlu0 1
        %640 = vperm.xlu0 %639, %v367
        %v641 = vpop.permute.xlu0 %640
        %643 = vset.pattern.permute.xlu0 1
        %644 = vperm.xlu0 %643, %v368
        %v645 = vpop.permute.xlu0 %644
        %647 = vset.pattern.permute.xlu0 1
        %648 = vperm.xlu0 %647, %v369
        %v649 = vpop.permute.xlu0 %648
        %651 = vset.pattern.permute.xlu0 1
        %652 = vperm.xlu0 %651, %v370
        %v653 = vpop.permute.xlu0 %652
        %655 = vset.pattern.permute.xlu0 1
        %656 = vperm.xlu0 %655, %v371
        %v657 = vpop.permute.xlu0 %656
        %659 = vset.pattern.permute.xlu0 1
        %660 = vperm.xlu0 %659, %v372
        %v661 = vpop.permute.xlu0 %660
        %663 = vset.pattern.permute.xlu0 1
        %664 = vperm.xlu0 %663, %v373
        %v665 = vpop.permute.xlu0 %664
        %667 = vset.pattern.permute.xlu0 1
        %668 = vperm.xlu0 %667, %v374
        %v669 = vpop.permute.xlu0 %668
        %671 = vset.pattern.permute.xlu0 1
        %672 = vperm.xlu0 %671, %v375
        %v673 = vpop.permute.xlu0 %672
        %675 = vset.pattern.permute.xlu0 1
        %676 = vperm.xlu0 %675, %v376
        %v677 = vpop.permute.xlu0 %676
        %679 = vset.pattern.permute.xlu0 1
        %680 = vperm.xlu0 %679, %v377
        %v681 = vpop.permute.xlu0 %680
        %683 = vset.pattern.permute.xlu0 1
        %684 = vperm.xlu0 %683, %v378
        %v685 = vpop.permute.xlu0 %684
        %687 = vset.pattern.permute.xlu0 1
        %688 = vperm.xlu0 %687, %v379
        %v689 = vpop.permute.xlu0 %688
        %691 = vset.pattern.permute.xlu0 1
        %692 = vperm.xlu0 %691, %v380
        %v693 = vpop.permute.xlu0 %692
        %695 = vset.pattern.permute.xlu0 1
        %696 = vperm.xlu0 %695, %v381
        %v697 = vpop.permute.xlu0 %696
        %699 = vset.pattern.permute.xlu0 1
        %700 = vperm.xlu0 %699, %v382
        %v701 = vpop.permute.xlu0 %700
        %703 = vset.pattern.permute.xlu0 1
        %704 = vperm.xlu0 %703, %v383
        %v705 = vpop.permute.xlu0 %704
        %707 = vset.pattern.permute.xlu0 1
        %708 = vperm.xlu0 %707, %v384
        %v709 = vpop.permute.xlu0 %708
        %711 = vset.pattern.permute.xlu0 1
        %712 = vperm.xlu0 %711, %v385
        %v713 = vpop.permute.xlu0 %712
        %715 = vset.pattern.permute.xlu0 1
        %716 = vperm.xlu0 %715, %v386
        %v717 = vpop.permute.xlu0 %716
        %719 = vset.pattern.permute.xlu0 1
        %720 = vperm.xlu0 %719, %v387
        %v721 = vpop.permute.xlu0 %720
        %723 = vset.pattern.permute.xlu0 1
        %724 = vperm.xlu0 %723, %v388
        %v725 = vpop.permute.xlu0 %724
        %727 = vset.pattern.permute.xlu0 1
        %728 = vperm.xlu0 %727, %v389
        %v729 = vpop.permute.xlu0 %728
        %731 = vset.pattern.permute.xlu0 1
        %732 = vperm.xlu0 %731, %v390
        %v733 = vpop.permute.xlu0 %732
        %735 = vset.pattern.permute.xlu0 1
        %736 = vperm.xlu0 %735, %v391
        %v737 = vpop.permute.xlu0 %736
        %739 = vset.pattern.permute.xlu0 1
        %740 = vperm.xlu0 %739, %v392
        %v741 = vpop.permute.xlu0 %740
        %743 = vset.pattern.permute.xlu0 1
        %744 = vperm.xlu0 %743, %v393
        %v745 = vpop.permute.xlu0 %744
        %747 = vset.pattern.permute.xlu0 1
        %748 = vperm.xlu0 %747, %v394
        %v749 = vpop.permute.xlu0 %748
        %v751 = vlaneseq
        %v752 = vshrl.u32 %v751, 7
        %v753 = vsub.s32 1, %v752
        %v754 = vrot.slane %v362, %v753
        %v755 = vsub.f32 %v625, %v754
        %v756 = vsub.f32 %v629, %v754
        %v757 = vsub.f32 %v633, %v754
        %v758 = vsub.f32 %v637, %v754
        %v759 = vsub.f32 %v641, %v754
        %v760 = vsub.f32 %v645, %v754
        %v761 = vsub.f32 %v649, %v754
        %v762 = vsub.f32 %v653, %v754
        %v763 = vsub.f32 %v657, %v754
        %v764 = vsub.f32 %v661, %v754
        %v765 = vsub.f32 %v665, %v754
        %v766 = vsub.f32 %v669, %v754
        %v767 = vsub.f32 %v673, %v754
        %v768 = vsub.f32 %v677, %v754
        %v769 = vsub.f32 %v681, %v754
        %v770 = vsub.f32 %v685, %v754
        %v771 = vsub.f32 %v689, %v754
        %v772 = vsub.f32 %v693, %v754
        %v773 = vsub.f32 %v697, %v754
        %v774 = vsub.f32 %v701, %v754
        %v775 = vsub.f32 %v705, %v754
        %v776 = vsub.f32 %v709, %v754
        %v777 = vsub.f32 %v713, %v754
        %v778 = vsub.f32 %v717, %v754
        %v779 = vsub.f32 %v721, %v754
        %v780 = vsub.f32 %v725, %v754
        %v781 = vsub.f32 %v729, %v754
        %v782 = vsub.f32 %v733, %v754
        %v783 = vsub.f32 %v737, %v754
        %v784 = vsub.f32 %v741, %v754
        %v785 = vsub.f32 %v745, %v754
        %v786 = vsub.f32 %v749, %v754
        %v787 = vmul.f32 %v755, %v755
        %v788 = vmul.f32 %v756, %v756
        %v789 = vmul.f32 %v757, %v757
        %v790 = vmul.f32 %v758, %v758
        %v791 = vmul.f32 %v759, %v759
        %v792 = vmul.f32 %v760, %v760
        %v793 = vmul.f32 %v761, %v761
        %v794 = vmul.f32 %v762, %v762
        %v795 = vmul.f32 %v763, %v763
        %v796 = vmul.f32 %v764, %v764
        %v797 = vmul.f32 %v765, %v765
        %v798 = vmul.f32 %v766, %v766
        %v799 = vmul.f32 %v767, %v767
        %v800 = vmul.f32 %v768, %v768
        %v801 = vmul.f32 %v769, %v769
        %v802 = vmul.f32 %v770, %v770
        %v803 = vmul.f32 %v771, %v771
        %v804 = vmul.f32 %v772, %v772
        %v805 = vmul.f32 %v773, %v773
        %v806 = vmul.f32 %v774, %v774
        %v807 = vmul.f32 %v775, %v775
        %v808 = vmul.f32 %v776, %v776
        %v809 = vmul.f32 %v777, %v777
        %v810 = vmul.f32 %v778, %v778
        %v811 = vmul.f32 %v779, %v779
        %v812 = vmul.f32 %v780, %v780
        %v813 = vmul.f32 %v781, %v781
        %v814 = vmul.f32 %v782, %v782
        %v815 = vmul.f32 %v783, %v783
        %v816 = vmul.f32 %v784, %v784
        %v817 = vmul.f32 %v785, %v785
        %v818 = vmul.f32 %v786, %v786
        %v819 = vadd.f32 %v591, %v787
        %v820 = vadd.f32 %v592, %v788
        %v821 = vadd.f32 %v593, %v789
        %v822 = vadd.f32 %v594, %v790
        %v823 = vadd.f32 %v595, %v791
        %v824 = vadd.f32 %v596, %v792
        %v825 = vadd.f32 %v597, %v793
        %v826 = vadd.f32 %v598, %v794
        %v827 = vadd.f32 %v599, %v795
        %v828 = vadd.f32 %v600, %v796
        %v829 = vadd.f32 %v601, %v797
        %v830 = vadd.f32 %v602, %v798
        %v831 = vadd.f32 %v603, %v799
        %v832 = vadd.f32 %v604, %v800
        %v833 = vadd.f32 %v605, %v801
        %v834 = vadd.f32 %v606, %v802
        %v835 = vadd.f32 %v607, %v803
        %v836 = vadd.f32 %v608, %v804
        %v837 = vadd.f32 %v609, %v805
        %v838 = vadd.f32 %v610, %v806
        %v839 = vadd.f32 %v611, %v807
        %v840 = vadd.f32 %v612, %v808
        %v841 = vadd.f32 %v613, %v809
        %v842 = vadd.f32 %v614, %v810
        %v843 = vadd.f32 %v615, %v811
        %v844 = vadd.f32 %v616, %v812
        %v845 = vadd.f32 %v617, %v813
        %v846 = vadd.f32 %v618, %v814
        %v847 = vadd.f32 %v619, %v815
        %v848 = vadd.f32 %v620, %v816
        %v849 = vadd.f32 %v621, %v817
        %v850 = vadd.f32 %v622, %v818
        %851 = vset.pattern.permute.xlu0 2
        %852 = vperm.xlu0 %851, %v363
        %v853 = vpop.permute.xlu0 %852
        %855 = vset.pattern.permute.xlu0 2
        %856 = vperm.xlu0 %855, %v364
        %v857 = vpop.permute.xlu0 %856
        %859 = vset.pattern.permute.xlu0 2
        %860 = vperm.xlu0 %859, %v365
        %v861 = vpop.permute.xlu0 %860
        %863 = vset.pattern.permute.xlu0 2
        %864 = vperm.xlu0 %863, %v366
        %v865 = vpop.permute.xlu0 %864
        %867 = vset.pattern.permute.xlu0 2
        %868 = vperm.xlu0 %867, %v367
        %v869 = vpop.permute.xlu0 %868
        %871 = vset.pattern.permute.xlu0 2
        %872 = vperm.xlu0 %871, %v368
        %v873 = vpop.permute.xlu0 %872
        %875 = vset.pattern.permute.xlu0 2
        %876 = vperm.xlu0 %875, %v369
        %v877 = vpop.permute.xlu0 %876
        %879 = vset.pattern.permute.xlu0 2
        %880 = vperm.xlu0 %879, %v370
        %v881 = vpop.permute.xlu0 %880
        %883 = vset.pattern.permute.xlu0 2
        %884 = vperm.xlu0 %883, %v371
        %v885 = vpop.permute.xlu0 %884
        %887 = vset.pattern.permute.xlu0 2
        %888 = vperm.xlu0 %887, %v372
        %v889 = vpop.permute.xlu0 %888
        %891 = vset.pattern.permute.xlu0 2
        %892 = vperm.xlu0 %891, %v373
        %v893 = vpop.permute.xlu0 %892
        %895 = vset.pattern.permute.xlu0 2
        %896 = vperm.xlu0 %895, %v374
        %v897 = vpop.permute.xlu0 %896
        %899 = vset.pattern.permute.xlu0 2
        %900 = vperm.xlu0 %899, %v375
        %v901 = vpop.permute.xlu0 %900
        %903 = vset.pattern.permute.xlu0 2
        %904 = vperm.xlu0 %903, %v376
        %v905 = vpop.permute.xlu0 %904
        %907 = vset.pattern.permute.xlu0 2
        %908 = vperm.xlu0 %907, %v377
        %v909 = vpop.permute.xlu0 %908
        %911 = vset.pattern.permute.xlu0 2
        %912 = vperm.xlu0 %911, %v378
        %v913 = vpop.permute.xlu0 %912
        %915 = vset.pattern.permute.xlu0 2
        %916 = vperm.xlu0 %915, %v379
        %v917 = vpop.permute.xlu0 %916
        %919 = vset.pattern.permute.xlu0 2
        %920 = vperm.xlu0 %919, %v380
        %v921 = vpop.permute.xlu0 %920
        %923 = vset.pattern.permute.xlu0 2
        %924 = vperm.xlu0 %923, %v381
        %v925 = vpop.permute.xlu0 %924
        %927 = vset.pattern.permute.xlu0 2
        %928 = vperm.xlu0 %927, %v382
        %v929 = vpop.permute.xlu0 %928
        %931 = vset.pattern.permute.xlu0 2
        %932 = vperm.xlu0 %931, %v383
        %v933 = vpop.permute.xlu0 %932
        %935 = vset.pattern.permute.xlu0 2
        %936 = vperm.xlu0 %935, %v384
        %v937 = vpop.permute.xlu0 %936
        %939 = vset.pattern.permute.xlu0 2
        %940 = vperm.xlu0 %939, %v385
        %v941 = vpop.permute.xlu0 %940
        %943 = vset.pattern.permute.xlu0 2
        %944 = vperm.xlu0 %943, %v386
        %v945 = vpop.permute.xlu0 %944
        %947 = vset.pattern.permute.xlu0 2
        %948 = vperm.xlu0 %947, %v387
        %v949 = vpop.permute.xlu0 %948
        %951 = vset.pattern.permute.xlu0 2
        %952 = vperm.xlu0 %951, %v388
        %v953 = vpop.permute.xlu0 %952
        %955 = vset.pattern.permute.xlu0 2
        %956 = vperm.xlu0 %955, %v389
        %v957 = vpop.permute.xlu0 %956
        %959 = vset.pattern.permute.xlu0 2
        %960 = vperm.xlu0 %959, %v390
        %v961 = vpop.permute.xlu0 %960
        %963 = vset.pattern.permute.xlu0 2
        %964 = vperm.xlu0 %963, %v391
        %v965 = vpop.permute.xlu0 %964
        %967 = vset.pattern.permute.xlu0 2
        %968 = vperm.xlu0 %967, %v392
        %v969 = vpop.permute.xlu0 %968
        %971 = vset.pattern.permute.xlu0 2
        %972 = vperm.xlu0 %971, %v393
        %v973 = vpop.permute.xlu0 %972
        %975 = vset.pattern.permute.xlu0 2
        %976 = vperm.xlu0 %975, %v394
        %v977 = vpop.permute.xlu0 %976
        %v979 = vlaneseq
        %v980 = vshrl.u32 %v979, 7
        %v981 = vsub.s32 2, %v980
        %v982 = vrot.slane %v362, %v981
        %v983 = vsub.f32 %v853, %v982
        %v984 = vsub.f32 %v857, %v982
        %v985 = vsub.f32 %v861, %v982
        %v986 = vsub.f32 %v865, %v982
        %v987 = vsub.f32 %v869, %v982
        %v988 = vsub.f32 %v873, %v982
        %v989 = vsub.f32 %v877, %v982
        %v990 = vsub.f32 %v881, %v982
        %v991 = vsub.f32 %v885, %v982
        %v992 = vsub.f32 %v889, %v982
        %v993 = vsub.f32 %v893, %v982
        %v994 = vsub.f32 %v897, %v982
        %v995 = vsub.f32 %v901, %v982
        %v996 = vsub.f32 %v905, %v982
        %v997 = vsub.f32 %v909, %v982
        %v998 = vsub.f32 %v913, %v982
        %v999 = vsub.f32 %v917, %v982
        %v1000 = vsub.f32 %v921, %v982
        %v1001 = vsub.f32 %v925, %v982
        %v1002 = vsub.f32 %v929, %v982
        %v1003 = vsub.f32 %v933, %v982
        %v1004 = vsub.f32 %v937, %v982
        %v1005 = vsub.f32 %v941, %v982
        %v1006 = vsub.f32 %v945, %v982
        %v1007 = vsub.f32 %v949, %v982
        %v1008 = vsub.f32 %v953, %v982
        %v1009 = vsub.f32 %v957, %v982
        %v1010 = vsub.f32 %v961, %v982
        %v1011 = vsub.f32 %v965, %v982
        %v1012 = vsub.f32 %v969, %v982
        %v1013 = vsub.f32 %v973, %v982
        %v1014 = vsub.f32 %v977, %v982
        %v1015 = vmul.f32 %v983, %v983
        %v1016 = vmul.f32 %v984, %v984
        %v1017 = vmul.f32 %v985, %v985
        %v1018 = vmul.f32 %v986, %v986
        %v1019 = vmul.f32 %v987, %v987
        %v1020 = vmul.f32 %v988, %v988
        %v1021 = vmul.f32 %v989, %v989
        %v1022 = vmul.f32 %v990, %v990
        %v1023 = vmul.f32 %v991, %v991
        %v1024 = vmul.f32 %v992, %v992
        %v1025 = vmul.f32 %v993, %v993
        %v1026 = vmul.f32 %v994, %v994
        %v1027 = vmul.f32 %v995, %v995
        %v1028 = vmul.f32 %v996, %v996
        %v1029 = vmul.f32 %v997, %v997
        %v1030 = vmul.f32 %v998, %v998
        %v1031 = vmul.f32 %v999, %v999
        %v1032 = vmul.f32 %v1000, %v1000
        %v1033 = vmul.f32 %v1001, %v1001
        %v1034 = vmul.f32 %v1002, %v1002
        %v1035 = vmul.f32 %v1003, %v1003
        %v1036 = vmul.f32 %v1004, %v1004
        %v1037 = vmul.f32 %v1005, %v1005
        %v1038 = vmul.f32 %v1006, %v1006
        %v1039 = vmul.f32 %v1007, %v1007
        %v1040 = vmul.f32 %v1008, %v1008
        %v1041 = vmul.f32 %v1009, %v1009
        %v1042 = vmul.f32 %v1010, %v1010
        %v1043 = vmul.f32 %v1011, %v1011
        %v1044 = vmul.f32 %v1012, %v1012
        %v1045 = vmul.f32 %v1013, %v1013
        %v1046 = vmul.f32 %v1014, %v1014
        %v1047 = vadd.f32 %v819, %v1015
        %v1048 = vadd.f32 %v820, %v1016
        %v1049 = vadd.f32 %v821, %v1017
        %v1050 = vadd.f32 %v822, %v1018
        %v1051 = vadd.f32 %v823, %v1019
        %v1052 = vadd.f32 %v824, %v1020
        %v1053 = vadd.f32 %v825, %v1021
        %v1054 = vadd.f32 %v826, %v1022
        %v1055 = vadd.f32 %v827, %v1023
        %v1056 = vadd.f32 %v828, %v1024
        %v1057 = vadd.f32 %v829, %v1025
        %v1058 = vadd.f32 %v830, %v1026
        %v1059 = vadd.f32 %v831, %v1027
        %v1060 = vadd.f32 %v832, %v1028
        %v1061 = vadd.f32 %v833, %v1029
        %v1062 = vadd.f32 %v834, %v1030
        %v1063 = vadd.f32 %v835, %v1031
        %v1064 = vadd.f32 %v836, %v1032
        %v1065 = vadd.f32 %v837, %v1033
        %v1066 = vadd.f32 %v838, %v1034
        %v1067 = vadd.f32 %v839, %v1035
        %v1068 = vadd.f32 %v840, %v1036
        %v1069 = vadd.f32 %v841, %v1037
        %v1070 = vadd.f32 %v842, %v1038
        %v1071 = vadd.f32 %v843, %v1039
        %v1072 = vadd.f32 %v844, %v1040
        %v1073 = vadd.f32 %v845, %v1041
        %v1074 = vadd.f32 %v846, %v1042
        %v1075 = vadd.f32 %v847, %v1043
        %v1076 = vadd.f32 %v848, %v1044
        %v1077 = vadd.f32 %v849, %v1045
        %v1078 = vadd.f32 %v850, %v1046
        %1079 = vmin.xlane.f32.xlu0 %v1047
        %v1080 = vpop.xlane.xlu0 %1079
        %1081 = vmin.xlane.f32.xlu0 %v1048
        %v1082 = vpop.xlane.xlu0 %1081
        %1083 = vmin.xlane.f32.xlu0 %v1049
        %v1084 = vpop.xlane.xlu0 %1083
        %1085 = vmin.xlane.f32.xlu0 %v1050
        %v1086 = vpop.xlane.xlu0 %1085
        %1087 = vmin.xlane.f32.xlu0 %v1051
        %v1088 = vpop.xlane.xlu0 %1087
        %1089 = vmin.xlane.f32.xlu0 %v1052
        %v1090 = vpop.xlane.xlu0 %1089
        %1091 = vmin.xlane.f32.xlu0 %v1053
        %v1092 = vpop.xlane.xlu0 %1091
        %1093 = vmin.xlane.f32.xlu0 %v1054
        %v1094 = vpop.xlane.xlu0 %1093
        %1095 = vmin.xlane.f32.xlu0 %v1055
        %v1096 = vpop.xlane.xlu0 %1095
        %1097 = vmin.xlane.f32.xlu0 %v1056
        %v1098 = vpop.xlane.xlu0 %1097
        %1099 = vmin.xlane.f32.xlu0 %v1057
        %v1100 = vpop.xlane.xlu0 %1099
        %1101 = vmin.xlane.f32.xlu0 %v1058
        %v1102 = vpop.xlane.xlu0 %1101
        %1103 = vmin.xlane.f32.xlu0 %v1059
        %v1104 = vpop.xlane.xlu0 %1103
        %1105 = vmin.xlane.f32.xlu0 %v1060
        %v1106 = vpop.xlane.xlu0 %1105
        %1107 = vmin.xlane.f32.xlu0 %v1061
        %v1108 = vpop.xlane.xlu0 %1107
        %1109 = vmin.xlane.f32.xlu0 %v1062
        %v1110 = vpop.xlane.xlu0 %1109
        %1111 = vmin.xlane.f32.xlu0 %v1063
        %v1112 = vpop.xlane.xlu0 %1111
        %1113 = vmin.xlane.f32.xlu0 %v1064
        %v1114 = vpop.xlane.xlu0 %1113
        %1115 = vmin.xlane.f32.xlu0 %v1065
        %v1116 = vpop.xlane.xlu0 %1115
        %1117 = vmin.xlane.f32.xlu0 %v1066
        %v1118 = vpop.xlane.xlu0 %1117
        %1119 = vmin.xlane.f32.xlu0 %v1067
        %v1120 = vpop.xlane.xlu0 %1119
        %1121 = vmin.xlane.f32.xlu0 %v1068
        %v1122 = vpop.xlane.xlu0 %1121
        %1123 = vmin.xlane.f32.xlu0 %v1069
        %v1124 = vpop.xlane.xlu0 %1123
        %1125 = vmin.xlane.f32.xlu0 %v1070
        %v1126 = vpop.xlane.xlu0 %1125
        %1127 = vmin.xlane.f32.xlu0 %v1071
        %v1128 = vpop.xlane.xlu0 %1127
        %1129 = vmin.xlane.f32.xlu0 %v1072
        %v1130 = vpop.xlane.xlu0 %1129
        %1131 = vmin.xlane.f32.xlu0 %v1073
        %v1132 = vpop.xlane.xlu0 %1131
        %1133 = vmin.xlane.f32.xlu0 %v1074
        %v1134 = vpop.xlane.xlu0 %1133
        %1135 = vmin.xlane.f32.xlu0 %v1075
        %v1136 = vpop.xlane.xlu0 %1135
        %1137 = vmin.xlane.f32.xlu0 %v1076
        %v1138 = vpop.xlane.xlu0 %1137
        %1139 = vmin.xlane.f32.xlu0 %v1077
        %v1140 = vpop.xlane.xlu0 %1139
        %1141 = vmin.xlane.f32.xlu0 %v1078
        %v1142 = vpop.xlane.xlu0 %1141
        %vm1143 = vcmp.eq.f32.partialorder %v1047, %v1080
        %vm1144 = vcmp.eq.f32.partialorder %v1048, %v1082
        %vm1145 = vcmp.eq.f32.partialorder %v1049, %v1084
        %vm1146 = vcmp.eq.f32.partialorder %v1050, %v1086
        %vm1147 = vcmp.eq.f32.partialorder %v1051, %v1088
        %vm1148 = vcmp.eq.f32.partialorder %v1052, %v1090
        %vm1149 = vcmp.eq.f32.partialorder %v1053, %v1092
        %vm1150 = vcmp.eq.f32.partialorder %v1054, %v1094
        %vm1151 = vcmp.eq.f32.partialorder %v1055, %v1096
        %vm1152 = vcmp.eq.f32.partialorder %v1056, %v1098
        %vm1153 = vcmp.eq.f32.partialorder %v1057, %v1100
        %vm1154 = vcmp.eq.f32.partialorder %v1058, %v1102
        %vm1155 = vcmp.eq.f32.partialorder %v1059, %v1104
        %vm1156 = vcmp.eq.f32.partialorder %v1060, %v1106
        %vm1157 = vcmp.eq.f32.partialorder %v1061, %v1108
        %vm1158 = vcmp.eq.f32.partialorder %v1062, %v1110
        %vm1159 = vcmp.eq.f32.partialorder %v1063, %v1112
        %vm1160 = vcmp.eq.f32.partialorder %v1064, %v1114
        %vm1161 = vcmp.eq.f32.partialorder %v1065, %v1116
        %vm1162 = vcmp.eq.f32.partialorder %v1066, %v1118
        %vm1163 = vcmp.eq.f32.partialorder %v1067, %v1120
        %vm1164 = vcmp.eq.f32.partialorder %v1068, %v1122
        %vm1165 = vcmp.eq.f32.partialorder %v1069, %v1124
        %vm1166 = vcmp.eq.f32.partialorder %v1070, %v1126
        %vm1167 = vcmp.eq.f32.partialorder %v1071, %v1128
        %vm1168 = vcmp.eq.f32.partialorder %v1072, %v1130
        %vm1169 = vcmp.eq.f32.partialorder %v1073, %v1132
        %vm1170 = vcmp.eq.f32.partialorder %v1074, %v1134
        %vm1171 = vcmp.eq.f32.partialorder %v1075, %v1136
        %vm1172 = vcmp.eq.f32.partialorder %v1076, %v1138
        %vm1173 = vcmp.eq.f32.partialorder %v1077, %v1140
        %vm1174 = vcmp.eq.f32.partialorder %v1078, %v1142
        %v1175 = vadd.f32 %v1080, 1e-08
        %v1176 = vadd.f32 %v1082, 1e-08
        %v1177 = vadd.f32 %v1084, 1e-08
        %v1178 = vadd.f32 %v1086, 1e-08
        %v1179 = vadd.f32 %v1088, 1e-08
        %v1180 = vadd.f32 %v1090, 1e-08
        %v1181 = vadd.f32 %v1092, 1e-08
        %v1182 = vadd.f32 %v1094, 1e-08
        %v1183 = vadd.f32 %v1096, 1e-08
        %v1184 = vadd.f32 %v1098, 1e-08
        %v1185 = vadd.f32 %v1100, 1e-08
        %v1186 = vadd.f32 %v1102, 1e-08
        %v1187 = vadd.f32 %v1104, 1e-08
        %v1188 = vadd.f32 %v1106, 1e-08
        %v1189 = vadd.f32 %v1108, 1e-08
        %v1190 = vadd.f32 %v1110, 1e-08
        %v1191 = vadd.f32 %v1112, 1e-08
        %v1192 = vadd.f32 %v1114, 1e-08
        %v1193 = vadd.f32 %v1116, 1e-08
        %v1194 = vadd.f32 %v1118, 1e-08
        %v1195 = vadd.f32 %v1120, 1e-08
        %v1196 = vadd.f32 %v1122, 1e-08
        %v1197 = vadd.f32 %v1124, 1e-08
        %v1198 = vadd.f32 %v1126, 1e-08
        %v1199 = vadd.f32 %v1128, 1e-08
        %v1200 = vadd.f32 %v1130, 1e-08
        %v1201 = vadd.f32 %v1132, 1e-08
        %v1202 = vadd.f32 %v1134, 1e-08
        %v1203 = vadd.f32 %v1136, 1e-08
        %v1204 = vadd.f32 %v1138, 1e-08
        %v1205 = vadd.f32 %v1140, 1e-08
        %v1206 = vadd.f32 %v1142, 1e-08
        %v1207 = vrcp.pop %v1175
        %v1208 = vrcp.pop %v1176
        %v1209 = vrcp.pop %v1177
        %v1210 = vrcp.pop %v1178
        %v1211 = vrcp.pop %v1179
        %v1212 = vrcp.pop %v1180
        %v1213 = vrcp.pop %v1181
        %v1214 = vrcp.pop %v1182
        %v1215 = vrcp.pop %v1183
        %v1216 = vrcp.pop %v1184
        %v1217 = vrcp.pop %v1185
        %v1218 = vrcp.pop %v1186
        %v1219 = vrcp.pop %v1187
        %v1220 = vrcp.pop %v1188
        %v1221 = vrcp.pop %v1189
        %v1222 = vrcp.pop %v1190
        %v1223 = vrcp.pop %v1191
        %v1224 = vrcp.pop %v1192
        %v1225 = vrcp.pop %v1193
        %v1226 = vrcp.pop %v1194
        %v1227 = vrcp.pop %v1195
        %v1228 = vrcp.pop %v1196
        %v1229 = vrcp.pop %v1197
        %v1230 = vrcp.pop %v1198
        %v1231 = vrcp.pop %v1199
        %v1232 = vrcp.pop %v1200
        %v1233 = vrcp.pop %v1201
        %v1234 = vrcp.pop %v1202
        %v1235 = vrcp.pop %v1203
        %v1236 = vrcp.pop %v1204
        %v1237 = vrcp.pop %v1205
        %v1238 = vrcp.pop %v1206
        %v1239 = vsel %vm1143, %v1207, 0.0
        %v1240 = vsel %vm1144, %v1208, 0.0
        %v1241 = vsel %vm1145, %v1209, 0.0
        %v1242 = vsel %vm1146, %v1210, 0.0
        %v1243 = vsel %vm1147, %v1211, 0.0
        %v1244 = vsel %vm1148, %v1212, 0.0
        %v1245 = vsel %vm1149, %v1213, 0.0
        %v1246 = vsel %vm1150, %v1214, 0.0
        %v1247 = vsel %vm1151, %v1215, 0.0
        %v1248 = vsel %vm1152, %v1216, 0.0
        %v1249 = vsel %vm1153, %v1217, 0.0
        %v1250 = vsel %vm1154, %v1218, 0.0
        %v1251 = vsel %vm1155, %v1219, 0.0
        %v1252 = vsel %vm1156, %v1220, 0.0
        %v1253 = vsel %vm1157, %v1221, 0.0
        %v1254 = vsel %vm1158, %v1222, 0.0
        %v1255 = vsel %vm1159, %v1223, 0.0
        %v1256 = vsel %vm1160, %v1224, 0.0
        %v1257 = vsel %vm1161, %v1225, 0.0
        %v1258 = vsel %vm1162, %v1226, 0.0
        %v1259 = vsel %vm1163, %v1227, 0.0
        %v1260 = vsel %vm1164, %v1228, 0.0
        %v1261 = vsel %vm1165, %v1229, 0.0
        %v1262 = vsel %vm1166, %v1230, 0.0
        %v1263 = vsel %vm1167, %v1231, 0.0
        %v1264 = vsel %vm1168, %v1232, 0.0
        %v1265 = vsel %vm1169, %v1233, 0.0
        %v1266 = vsel %vm1170, %v1234, 0.0
        %v1267 = vsel %vm1171, %v1235, 0.0
        %v1268 = vsel %vm1172, %v1236, 0.0
        %v1269 = vsel %vm1173, %v1237, 0.0
        %v1270 = vsel %vm1174, %v1238, 0.0
        %v1271 = vadd.f32 %v1207, 0.0
        %v1272 = vadd.f32 %v1208, 0.0
        %v1273 = vadd.f32 %v1209, 0.0
        %v1274 = vadd.f32 %v1210, 0.0
        %v1275 = vadd.f32 %v1211, 0.0
        %v1276 = vadd.f32 %v1212, 0.0
        %v1277 = vadd.f32 %v1213, 0.0
        %v1278 = vadd.f32 %v1214, 0.0
        %v1279 = vadd.f32 %v1215, 0.0
        %v1280 = vadd.f32 %v1216, 0.0
        %v1281 = vadd.f32 %v1217, 0.0
        %v1282 = vadd.f32 %v1218, 0.0
        %v1283 = vadd.f32 %v1219, 0.0
        %v1284 = vadd.f32 %v1220, 0.0
        %v1285 = vadd.f32 %v1221, 0.0
        %v1286 = vadd.f32 %v1222, 0.0
        %v1287 = vadd.f32 %v1223, 0.0
        %v1288 = vadd.f32 %v1224, 0.0
        %v1289 = vadd.f32 %v1225, 0.0
        %v1290 = vadd.f32 %v1226, 0.0
        %v1291 = vadd.f32 %v1227, 0.0
        %v1292 = vadd.f32 %v1228, 0.0
        %v1293 = vadd.f32 %v1229, 0.0
        %v1294 = vadd.f32 %v1230, 0.0
        %v1295 = vadd.f32 %v1231, 0.0
        %v1296 = vadd.f32 %v1232, 0.0
        %v1297 = vadd.f32 %v1233, 0.0
        %v1298 = vadd.f32 %v1234, 0.0
        %v1299 = vadd.f32 %v1235, 0.0
        %v1300 = vadd.f32 %v1236, 0.0
        %v1301 = vadd.f32 %v1237, 0.0
        %v1302 = vadd.f32 %v1238, 0.0
        %v1303 = vsel %vm1143, inf, %v1047
        %v1304 = vsel %vm1144, inf, %v1048
        %v1305 = vsel %vm1145, inf, %v1049
        %v1306 = vsel %vm1146, inf, %v1050
        %v1307 = vsel %vm1147, inf, %v1051
        %v1308 = vsel %vm1148, inf, %v1052
        %v1309 = vsel %vm1149, inf, %v1053
        %v1310 = vsel %vm1150, inf, %v1054
        %v1311 = vsel %vm1151, inf, %v1055
        %v1312 = vsel %vm1152, inf, %v1056
        %v1313 = vsel %vm1153, inf, %v1057
        %v1314 = vsel %vm1154, inf, %v1058
        %v1315 = vsel %vm1155, inf, %v1059
        %v1316 = vsel %vm1156, inf, %v1060
        %v1317 = vsel %vm1157, inf, %v1061
        %v1318 = vsel %vm1158, inf, %v1062
        %v1319 = vsel %vm1159, inf, %v1063
        %v1320 = vsel %vm1160, inf, %v1064
        %v1321 = vsel %vm1161, inf, %v1065
        %v1322 = vsel %vm1162, inf, %v1066
        %v1323 = vsel %vm1163, inf, %v1067
        %v1324 = vsel %vm1164, inf, %v1068
        %v1325 = vsel %vm1165, inf, %v1069
        %v1326 = vsel %vm1166, inf, %v1070
        %v1327 = vsel %vm1167, inf, %v1071
        %v1328 = vsel %vm1168, inf, %v1072
        %v1329 = vsel %vm1169, inf, %v1073
        %v1330 = vsel %vm1170, inf, %v1074
        %v1331 = vsel %vm1171, inf, %v1075
        %v1332 = vsel %vm1172, inf, %v1076
        %v1333 = vsel %vm1173, inf, %v1077
        %v1334 = vsel %vm1174, inf, %v1078
        %1335 = vmin.xlane.f32.xlu0 %v1303
        %v1336 = vpop.xlane.xlu0 %1335
        %1337 = vmin.xlane.f32.xlu0 %v1304
        %v1338 = vpop.xlane.xlu0 %1337
        %1339 = vmin.xlane.f32.xlu0 %v1305
        %v1340 = vpop.xlane.xlu0 %1339
        %1341 = vmin.xlane.f32.xlu0 %v1306
        %v1342 = vpop.xlane.xlu0 %1341
        %1343 = vmin.xlane.f32.xlu0 %v1307
        %v1344 = vpop.xlane.xlu0 %1343
        %1345 = vmin.xlane.f32.xlu0 %v1308
        %v1346 = vpop.xlane.xlu0 %1345
        %1347 = vmin.xlane.f32.xlu0 %v1309
        %v1348 = vpop.xlane.xlu0 %1347
        %1349 = vmin.xlane.f32.xlu0 %v1310
        %v1350 = vpop.xlane.xlu0 %1349
        %1351 = vmin.xlane.f32.xlu0 %v1311
        %v1352 = vpop.xlane.xlu0 %1351
        %1353 = vmin.xlane.f32.xlu0 %v1312
        %v1354 = vpop.xlane.xlu0 %1353
        %1355 = vmin.xlane.f32.xlu0 %v1313
        %v1356 = vpop.xlane.xlu0 %1355
        %1357 = vmin.xlane.f32.xlu0 %v1314
        %v1358 = vpop.xlane.xlu0 %1357
        %1359 = vmin.xlane.f32.xlu0 %v1315
        %v1360 = vpop.xlane.xlu0 %1359
        %1361 = vmin.xlane.f32.xlu0 %v1316
        %v1362 = vpop.xlane.xlu0 %1361
        %1363 = vmin.xlane.f32.xlu0 %v1317
        %v1364 = vpop.xlane.xlu0 %1363
        %1365 = vmin.xlane.f32.xlu0 %v1318
        %v1366 = vpop.xlane.xlu0 %1365
        %1367 = vmin.xlane.f32.xlu0 %v1319
        %v1368 = vpop.xlane.xlu0 %1367
        %1369 = vmin.xlane.f32.xlu0 %v1320
        %v1370 = vpop.xlane.xlu0 %1369
        %1371 = vmin.xlane.f32.xlu0 %v1321
        %v1372 = vpop.xlane.xlu0 %1371
        %1373 = vmin.xlane.f32.xlu0 %v1322
        %v1374 = vpop.xlane.xlu0 %1373
        %1375 = vmin.xlane.f32.xlu0 %v1323
        %v1376 = vpop.xlane.xlu0 %1375
        %1377 = vmin.xlane.f32.xlu0 %v1324
        %v1378 = vpop.xlane.xlu0 %1377
        %1379 = vmin.xlane.f32.xlu0 %v1325
        %v1380 = vpop.xlane.xlu0 %1379
        %1381 = vmin.xlane.f32.xlu0 %v1326
        %v1382 = vpop.xlane.xlu0 %1381
        %1383 = vmin.xlane.f32.xlu0 %v1327
        %v1384 = vpop.xlane.xlu0 %1383
        %1385 = vmin.xlane.f32.xlu0 %v1328
        %v1386 = vpop.xlane.xlu0 %1385
        %1387 = vmin.xlane.f32.xlu0 %v1329
        %v1388 = vpop.xlane.xlu0 %1387
        %1389 = vmin.xlane.f32.xlu0 %v1330
        %v1390 = vpop.xlane.xlu0 %1389
        %1391 = vmin.xlane.f32.xlu0 %v1331
        %v1392 = vpop.xlane.xlu0 %1391
        %1393 = vmin.xlane.f32.xlu0 %v1332
        %v1394 = vpop.xlane.xlu0 %1393
        %1395 = vmin.xlane.f32.xlu0 %v1333
        %v1396 = vpop.xlane.xlu0 %1395
        %1397 = vmin.xlane.f32.xlu0 %v1334
        %v1398 = vpop.xlane.xlu0 %1397
        %vm1399 = vcmp.eq.f32.partialorder %v1303, %v1336
        %vm1400 = vcmp.eq.f32.partialorder %v1304, %v1338
        %vm1401 = vcmp.eq.f32.partialorder %v1305, %v1340
        %vm1402 = vcmp.eq.f32.partialorder %v1306, %v1342
        %vm1403 = vcmp.eq.f32.partialorder %v1307, %v1344
        %vm1404 = vcmp.eq.f32.partialorder %v1308, %v1346
        %vm1405 = vcmp.eq.f32.partialorder %v1309, %v1348
        %vm1406 = vcmp.eq.f32.partialorder %v1310, %v1350
        %vm1407 = vcmp.eq.f32.partialorder %v1311, %v1352
        %vm1408 = vcmp.eq.f32.partialorder %v1312, %v1354
        %vm1409 = vcmp.eq.f32.partialorder %v1313, %v1356
        %vm1410 = vcmp.eq.f32.partialorder %v1314, %v1358
        %vm1411 = vcmp.eq.f32.partialorder %v1315, %v1360
        %vm1412 = vcmp.eq.f32.partialorder %v1316, %v1362
        %vm1413 = vcmp.eq.f32.partialorder %v1317, %v1364
        %vm1414 = vcmp.eq.f32.partialorder %v1318, %v1366
        %vm1415 = vcmp.eq.f32.partialorder %v1319, %v1368
        %vm1416 = vcmp.eq.f32.partialorder %v1320, %v1370
        %vm1417 = vcmp.eq.f32.partialorder %v1321, %v1372
        %vm1418 = vcmp.eq.f32.partialorder %v1322, %v1374
        %vm1419 = vcmp.eq.f32.partialorder %v1323, %v1376
        %vm1420 = vcmp.eq.f32.partialorder %v1324, %v1378
        %vm1421 = vcmp.eq.f32.partialorder %v1325, %v1380
        %vm1422 = vcmp.eq.f32.partialorder %v1326, %v1382
        %vm1423 = vcmp.eq.f32.partialorder %v1327, %v1384
        %vm1424 = vcmp.eq.f32.partialorder %v1328, %v1386
        %vm1425 = vcmp.eq.f32.partialorder %v1329, %v1388
        %vm1426 = vcmp.eq.f32.partialorder %v1330, %v1390
        %vm1427 = vcmp.eq.f32.partialorder %v1331, %v1392
        %vm1428 = vcmp.eq.f32.partialorder %v1332, %v1394
        %vm1429 = vcmp.eq.f32.partialorder %v1333, %v1396
        %vm1430 = vcmp.eq.f32.partialorder %v1334, %v1398
        %v1431 = vadd.f32 %v1336, 1e-08
        %v1432 = vadd.f32 %v1338, 1e-08
        %v1433 = vadd.f32 %v1340, 1e-08
        %v1434 = vadd.f32 %v1342, 1e-08
        %v1435 = vadd.f32 %v1344, 1e-08
        %v1436 = vadd.f32 %v1346, 1e-08
        %v1437 = vadd.f32 %v1348, 1e-08
        %v1438 = vadd.f32 %v1350, 1e-08
        %v1439 = vadd.f32 %v1352, 1e-08
        %v1440 = vadd.f32 %v1354, 1e-08
        %v1441 = vadd.f32 %v1356, 1e-08
        %v1442 = vadd.f32 %v1358, 1e-08
        %v1443 = vadd.f32 %v1360, 1e-08
        %v1444 = vadd.f32 %v1362, 1e-08
        %v1445 = vadd.f32 %v1364, 1e-08
        %v1446 = vadd.f32 %v1366, 1e-08
        %v1447 = vadd.f32 %v1368, 1e-08
        %v1448 = vadd.f32 %v1370, 1e-08
        %v1449 = vadd.f32 %v1372, 1e-08
        %v1450 = vadd.f32 %v1374, 1e-08
        %v1451 = vadd.f32 %v1376, 1e-08
        %v1452 = vadd.f32 %v1378, 1e-08
        %v1453 = vadd.f32 %v1380, 1e-08
        %v1454 = vadd.f32 %v1382, 1e-08
        %v1455 = vadd.f32 %v1384, 1e-08
        %v1456 = vadd.f32 %v1386, 1e-08
        %v1457 = vadd.f32 %v1388, 1e-08
        %v1458 = vadd.f32 %v1390, 1e-08
        %v1459 = vadd.f32 %v1392, 1e-08
        %v1460 = vadd.f32 %v1394, 1e-08
        %v1461 = vadd.f32 %v1396, 1e-08
        %v1462 = vadd.f32 %v1398, 1e-08
        %v1463 = vrcp.pop %v1431
        %v1464 = vrcp.pop %v1432
        %v1465 = vrcp.pop %v1433
        %v1466 = vrcp.pop %v1434
        %v1467 = vrcp.pop %v1435
        %v1468 = vrcp.pop %v1436
        %v1469 = vrcp.pop %v1437
        %v1470 = vrcp.pop %v1438
        %v1471 = vrcp.pop %v1439
        %v1472 = vrcp.pop %v1440
        %v1473 = vrcp.pop %v1441
        %v1474 = vrcp.pop %v1442
        %v1475 = vrcp.pop %v1443
        %v1476 = vrcp.pop %v1444
        %v1477 = vrcp.pop %v1445
        %v1478 = vrcp.pop %v1446
        %v1479 = vrcp.pop %v1447
        %v1480 = vrcp.pop %v1448
        %v1481 = vrcp.pop %v1449
        %v1482 = vrcp.pop %v1450
        %v1483 = vrcp.pop %v1451
        %v1484 = vrcp.pop %v1452
        %v1485 = vrcp.pop %v1453
        %v1486 = vrcp.pop %v1454
        %v1487 = vrcp.pop %v1455
        %v1488 = vrcp.pop %v1456
        %v1489 = vrcp.pop %v1457
        %v1490 = vrcp.pop %v1458
        %v1491 = vrcp.pop %v1459
        %v1492 = vrcp.pop %v1460
        %v1493 = vrcp.pop %v1461
        %v1494 = vrcp.pop %v1462
        %v1495 = vsel %vm1399, %v1463, %v1239
        %v1496 = vsel %vm1400, %v1464, %v1240
        %v1497 = vsel %vm1401, %v1465, %v1241
        %v1498 = vsel %vm1402, %v1466, %v1242
        %v1499 = vsel %vm1403, %v1467, %v1243
        %v1500 = vsel %vm1404, %v1468, %v1244
        %v1501 = vsel %vm1405, %v1469, %v1245
        %v1502 = vsel %vm1406, %v1470, %v1246
        %v1503 = vsel %vm1407, %v1471, %v1247
        %v1504 = vsel %vm1408, %v1472, %v1248
        %v1505 = vsel %vm1409, %v1473, %v1249
        %v1506 = vsel %vm1410, %v1474, %v1250
        %v1507 = vsel %vm1411, %v1475, %v1251
        %v1508 = vsel %vm1412, %v1476, %v1252
        %v1509 = vsel %vm1413, %v1477, %v1253
        %v1510 = vsel %vm1414, %v1478, %v1254
        %v1511 = vsel %vm1415, %v1479, %v1255
        %v1512 = vsel %vm1416, %v1480, %v1256
        %v1513 = vsel %vm1417, %v1481, %v1257
        %v1514 = vsel %vm1418, %v1482, %v1258
        %v1515 = vsel %vm1419, %v1483, %v1259
        %v1516 = vsel %vm1420, %v1484, %v1260
        %v1517 = vsel %vm1421, %v1485, %v1261
        %v1518 = vsel %vm1422, %v1486, %v1262
        %v1519 = vsel %vm1423, %v1487, %v1263
        %v1520 = vsel %vm1424, %v1488, %v1264
        %v1521 = vsel %vm1425, %v1489, %v1265
        %v1522 = vsel %vm1426, %v1490, %v1266
        %v1523 = vsel %vm1427, %v1491, %v1267
        %v1524 = vsel %vm1428, %v1492, %v1268
        %v1525 = vsel %vm1429, %v1493, %v1269
        %v1526 = vsel %vm1430, %v1494, %v1270
        %v1527 = vadd.f32 %v1271, %v1463
        %v1528 = vadd.f32 %v1272, %v1464
        %v1529 = vadd.f32 %v1273, %v1465
        %v1530 = vadd.f32 %v1274, %v1466
        %v1531 = vadd.f32 %v1275, %v1467
        %v1532 = vadd.f32 %v1276, %v1468
        %v1533 = vadd.f32 %v1277, %v1469
        %v1534 = vadd.f32 %v1278, %v1470
        %v1535 = vadd.f32 %v1279, %v1471
        %v1536 = vadd.f32 %v1280, %v1472
        %v1537 = vadd.f32 %v1281, %v1473
        %v1538 = vadd.f32 %v1282, %v1474
        %v1539 = vadd.f32 %v1283, %v1475
        %v1540 = vadd.f32 %v1284, %v1476
        %v1541 = vadd.f32 %v1285, %v1477
        %v1542 = vadd.f32 %v1286, %v1478
        %v1543 = vadd.f32 %v1287, %v1479
        %v1544 = vadd.f32 %v1288, %v1480
        %v1545 = vadd.f32 %v1289, %v1481
        %v1546 = vadd.f32 %v1290, %v1482
        %v1547 = vadd.f32 %v1291, %v1483
        %v1548 = vadd.f32 %v1292, %v1484
        %v1549 = vadd.f32 %v1293, %v1485
        %v1550 = vadd.f32 %v1294, %v1486
        %v1551 = vadd.f32 %v1295, %v1487
        %v1552 = vadd.f32 %v1296, %v1488
        %v1553 = vadd.f32 %v1297, %v1489
        %v1554 = vadd.f32 %v1298, %v1490
        %v1555 = vadd.f32 %v1299, %v1491
        %v1556 = vadd.f32 %v1300, %v1492
        %v1557 = vadd.f32 %v1301, %v1493
        %v1558 = vadd.f32 %v1302, %v1494
        %v1559 = vsel %vm1399, inf, %v1303
        %v1560 = vsel %vm1400, inf, %v1304
        %v1561 = vsel %vm1401, inf, %v1305
        %v1562 = vsel %vm1402, inf, %v1306
        %v1563 = vsel %vm1403, inf, %v1307
        %v1564 = vsel %vm1404, inf, %v1308
        %v1565 = vsel %vm1405, inf, %v1309
        %v1566 = vsel %vm1406, inf, %v1310
        %v1567 = vsel %vm1407, inf, %v1311
        %v1568 = vsel %vm1408, inf, %v1312
        %v1569 = vsel %vm1409, inf, %v1313
        %v1570 = vsel %vm1410, inf, %v1314
        %v1571 = vsel %vm1411, inf, %v1315
        %v1572 = vsel %vm1412, inf, %v1316
        %v1573 = vsel %vm1413, inf, %v1317
        %v1574 = vsel %vm1414, inf, %v1318
        %v1575 = vsel %vm1415, inf, %v1319
        %v1576 = vsel %vm1416, inf, %v1320
        %v1577 = vsel %vm1417, inf, %v1321
        %v1578 = vsel %vm1418, inf, %v1322
        %v1579 = vsel %vm1419, inf, %v1323
        %v1580 = vsel %vm1420, inf, %v1324
        %v1581 = vsel %vm1421, inf, %v1325
        %v1582 = vsel %vm1422, inf, %v1326
        %v1583 = vsel %vm1423, inf, %v1327
        %v1584 = vsel %vm1424, inf, %v1328
        %v1585 = vsel %vm1425, inf, %v1329
        %v1586 = vsel %vm1426, inf, %v1330
        %v1587 = vsel %vm1427, inf, %v1331
        %v1588 = vsel %vm1428, inf, %v1332
        %v1589 = vsel %vm1429, inf, %v1333
        %v1590 = vsel %vm1430, inf, %v1334
        %1591 = vmin.xlane.f32.xlu0 %v1559
        %v1592 = vpop.xlane.xlu0 %1591
        %1593 = vmin.xlane.f32.xlu0 %v1560
        %v1594 = vpop.xlane.xlu0 %1593
        %1595 = vmin.xlane.f32.xlu0 %v1561
        %v1596 = vpop.xlane.xlu0 %1595
        %1597 = vmin.xlane.f32.xlu0 %v1562
        %v1598 = vpop.xlane.xlu0 %1597
        %1599 = vmin.xlane.f32.xlu0 %v1563
        %v1600 = vpop.xlane.xlu0 %1599
        %1601 = vmin.xlane.f32.xlu0 %v1564
        %v1602 = vpop.xlane.xlu0 %1601
        %1603 = vmin.xlane.f32.xlu0 %v1565
        %v1604 = vpop.xlane.xlu0 %1603
        %1605 = vmin.xlane.f32.xlu0 %v1566
        %v1606 = vpop.xlane.xlu0 %1605
        %1607 = vmin.xlane.f32.xlu0 %v1567
        %v1608 = vpop.xlane.xlu0 %1607
        %1609 = vmin.xlane.f32.xlu0 %v1568
        %v1610 = vpop.xlane.xlu0 %1609
        %1611 = vmin.xlane.f32.xlu0 %v1569
        %v1612 = vpop.xlane.xlu0 %1611
        %1613 = vmin.xlane.f32.xlu0 %v1570
        %v1614 = vpop.xlane.xlu0 %1613
        %1615 = vmin.xlane.f32.xlu0 %v1571
        %v1616 = vpop.xlane.xlu0 %1615
        %1617 = vmin.xlane.f32.xlu0 %v1572
        %v1618 = vpop.xlane.xlu0 %1617
        %1619 = vmin.xlane.f32.xlu0 %v1573
        %v1620 = vpop.xlane.xlu0 %1619
        %1621 = vmin.xlane.f32.xlu0 %v1574
        %v1622 = vpop.xlane.xlu0 %1621
        %1623 = vmin.xlane.f32.xlu0 %v1575
        %v1624 = vpop.xlane.xlu0 %1623
        %1625 = vmin.xlane.f32.xlu0 %v1576
        %v1626 = vpop.xlane.xlu0 %1625
        %1627 = vmin.xlane.f32.xlu0 %v1577
        %v1628 = vpop.xlane.xlu0 %1627
        %1629 = vmin.xlane.f32.xlu0 %v1578
        %v1630 = vpop.xlane.xlu0 %1629
        %1631 = vmin.xlane.f32.xlu0 %v1579
        %v1632 = vpop.xlane.xlu0 %1631
        %1633 = vmin.xlane.f32.xlu0 %v1580
        %v1634 = vpop.xlane.xlu0 %1633
        %1635 = vmin.xlane.f32.xlu0 %v1581
        %v1636 = vpop.xlane.xlu0 %1635
        %1637 = vmin.xlane.f32.xlu0 %v1582
        %v1638 = vpop.xlane.xlu0 %1637
        %1639 = vmin.xlane.f32.xlu0 %v1583
        %v1640 = vpop.xlane.xlu0 %1639
        %1641 = vmin.xlane.f32.xlu0 %v1584
        %v1642 = vpop.xlane.xlu0 %1641
        %1643 = vmin.xlane.f32.xlu0 %v1585
        %v1644 = vpop.xlane.xlu0 %1643
        %1645 = vmin.xlane.f32.xlu0 %v1586
        %v1646 = vpop.xlane.xlu0 %1645
        %1647 = vmin.xlane.f32.xlu0 %v1587
        %v1648 = vpop.xlane.xlu0 %1647
        %1649 = vmin.xlane.f32.xlu0 %v1588
        %v1650 = vpop.xlane.xlu0 %1649
        %1651 = vmin.xlane.f32.xlu0 %v1589
        %v1652 = vpop.xlane.xlu0 %1651
        %1653 = vmin.xlane.f32.xlu0 %v1590
        %v1654 = vpop.xlane.xlu0 %1653
        %vm1655 = vcmp.eq.f32.partialorder %v1559, %v1592
        %vm1656 = vcmp.eq.f32.partialorder %v1560, %v1594
        %vm1657 = vcmp.eq.f32.partialorder %v1561, %v1596
        %vm1658 = vcmp.eq.f32.partialorder %v1562, %v1598
        %vm1659 = vcmp.eq.f32.partialorder %v1563, %v1600
        %vm1660 = vcmp.eq.f32.partialorder %v1564, %v1602
        %vm1661 = vcmp.eq.f32.partialorder %v1565, %v1604
        %vm1662 = vcmp.eq.f32.partialorder %v1566, %v1606
        %vm1663 = vcmp.eq.f32.partialorder %v1567, %v1608
        %vm1664 = vcmp.eq.f32.partialorder %v1568, %v1610
        %vm1665 = vcmp.eq.f32.partialorder %v1569, %v1612
        %vm1666 = vcmp.eq.f32.partialorder %v1570, %v1614
        %vm1667 = vcmp.eq.f32.partialorder %v1571, %v1616
        %vm1668 = vcmp.eq.f32.partialorder %v1572, %v1618
        %vm1669 = vcmp.eq.f32.partialorder %v1573, %v1620
        %vm1670 = vcmp.eq.f32.partialorder %v1574, %v1622
        %vm1671 = vcmp.eq.f32.partialorder %v1575, %v1624
        %vm1672 = vcmp.eq.f32.partialorder %v1576, %v1626
        %vm1673 = vcmp.eq.f32.partialorder %v1577, %v1628
        %vm1674 = vcmp.eq.f32.partialorder %v1578, %v1630
        %vm1675 = vcmp.eq.f32.partialorder %v1579, %v1632
        %vm1676 = vcmp.eq.f32.partialorder %v1580, %v1634
        %vm1677 = vcmp.eq.f32.partialorder %v1581, %v1636
        %vm1678 = vcmp.eq.f32.partialorder %v1582, %v1638
        %vm1679 = vcmp.eq.f32.partialorder %v1583, %v1640
        %vm1680 = vcmp.eq.f32.partialorder %v1584, %v1642
        %vm1681 = vcmp.eq.f32.partialorder %v1585, %v1644
        %vm1682 = vcmp.eq.f32.partialorder %v1586, %v1646
        %vm1683 = vcmp.eq.f32.partialorder %v1587, %v1648
        %vm1684 = vcmp.eq.f32.partialorder %v1588, %v1650
        %vm1685 = vcmp.eq.f32.partialorder %v1589, %v1652
        %vm1686 = vcmp.eq.f32.partialorder %v1590, %v1654
        %v1687 = vadd.f32 %v1592, 1e-08
        %v1688 = vadd.f32 %v1594, 1e-08
        %v1689 = vadd.f32 %v1596, 1e-08
        %v1690 = vadd.f32 %v1598, 1e-08
        %v1691 = vadd.f32 %v1600, 1e-08
        %v1692 = vadd.f32 %v1602, 1e-08
        %v1693 = vadd.f32 %v1604, 1e-08
        %v1694 = vadd.f32 %v1606, 1e-08
        %v1695 = vadd.f32 %v1608, 1e-08
        %v1696 = vadd.f32 %v1610, 1e-08
        %v1697 = vadd.f32 %v1612, 1e-08
        %v1698 = vadd.f32 %v1614, 1e-08
        %v1699 = vadd.f32 %v1616, 1e-08
        %v1700 = vadd.f32 %v1618, 1e-08
        %v1701 = vadd.f32 %v1620, 1e-08
        %v1702 = vadd.f32 %v1622, 1e-08
        %v1703 = vadd.f32 %v1624, 1e-08
        %v1704 = vadd.f32 %v1626, 1e-08
        %v1705 = vadd.f32 %v1628, 1e-08
        %v1706 = vadd.f32 %v1630, 1e-08
        %v1707 = vadd.f32 %v1632, 1e-08
        %v1708 = vadd.f32 %v1634, 1e-08
        %v1709 = vadd.f32 %v1636, 1e-08
        %v1710 = vadd.f32 %v1638, 1e-08
        %v1711 = vadd.f32 %v1640, 1e-08
        %v1712 = vadd.f32 %v1642, 1e-08
        %v1713 = vadd.f32 %v1644, 1e-08
        %v1714 = vadd.f32 %v1646, 1e-08
        %v1715 = vadd.f32 %v1648, 1e-08
        %v1716 = vadd.f32 %v1650, 1e-08
        %v1717 = vadd.f32 %v1652, 1e-08
        %v1718 = vadd.f32 %v1654, 1e-08
        %v1719 = vrcp.pop %v1687
        %v1720 = vrcp.pop %v1688
        %v1721 = vrcp.pop %v1689
        %v1722 = vrcp.pop %v1690
        %v1723 = vrcp.pop %v1691
        %v1724 = vrcp.pop %v1692
        %v1725 = vrcp.pop %v1693
        %v1726 = vrcp.pop %v1694
        %v1727 = vrcp.pop %v1695
        %v1728 = vrcp.pop %v1696
        %v1729 = vrcp.pop %v1697
        %v1730 = vrcp.pop %v1698
        %v1731 = vrcp.pop %v1699
        %v1732 = vrcp.pop %v1700
        %v1733 = vrcp.pop %v1701
        %v1734 = vrcp.pop %v1702
        %v1735 = vrcp.pop %v1703
        %v1736 = vrcp.pop %v1704
        %v1737 = vrcp.pop %v1705
        %v1738 = vrcp.pop %v1706
        %v1739 = vrcp.pop %v1707
        %v1740 = vrcp.pop %v1708
        %v1741 = vrcp.pop %v1709
        %v1742 = vrcp.pop %v1710
        %v1743 = vrcp.pop %v1711
        %v1744 = vrcp.pop %v1712
        %v1745 = vrcp.pop %v1713
        %v1746 = vrcp.pop %v1714
        %v1747 = vrcp.pop %v1715
        %v1748 = vrcp.pop %v1716
        %v1749 = vrcp.pop %v1717
        %v1750 = vrcp.pop %v1718
        %v1751 = vsel %vm1655, %v1719, %v1495
        %v1752 = vsel %vm1656, %v1720, %v1496
        %v1753 = vsel %vm1657, %v1721, %v1497
        %v1754 = vsel %vm1658, %v1722, %v1498
        %v1755 = vsel %vm1659, %v1723, %v1499
        %v1756 = vsel %vm1660, %v1724, %v1500
        %v1757 = vsel %vm1661, %v1725, %v1501
        %v1758 = vsel %vm1662, %v1726, %v1502
        %v1759 = vsel %vm1663, %v1727, %v1503
        %v1760 = vsel %vm1664, %v1728, %v1504
        %v1761 = vsel %vm1665, %v1729, %v1505
        %v1762 = vsel %vm1666, %v1730, %v1506
        %v1763 = vsel %vm1667, %v1731, %v1507
        %v1764 = vsel %vm1668, %v1732, %v1508
        %v1765 = vsel %vm1669, %v1733, %v1509
        %v1766 = vsel %vm1670, %v1734, %v1510
        %v1767 = vsel %vm1671, %v1735, %v1511
        %v1768 = vsel %vm1672, %v1736, %v1512
        %v1769 = vsel %vm1673, %v1737, %v1513
        %v1770 = vsel %vm1674, %v1738, %v1514
        %v1771 = vsel %vm1675, %v1739, %v1515
        %v1772 = vsel %vm1676, %v1740, %v1516
        %v1773 = vsel %vm1677, %v1741, %v1517
        %v1774 = vsel %vm1678, %v1742, %v1518
        %v1775 = vsel %vm1679, %v1743, %v1519
        %v1776 = vsel %vm1680, %v1744, %v1520
        %v1777 = vsel %vm1681, %v1745, %v1521
        %v1778 = vsel %vm1682, %v1746, %v1522
        %v1779 = vsel %vm1683, %v1747, %v1523
        %v1780 = vsel %vm1684, %v1748, %v1524
        %v1781 = vsel %vm1685, %v1749, %v1525
        %v1782 = vsel %vm1686, %v1750, %v1526
        %v1783 = vadd.f32 %v1527, %v1719
        %v1784 = vadd.f32 %v1528, %v1720
        %v1785 = vadd.f32 %v1529, %v1721
        %v1786 = vadd.f32 %v1530, %v1722
        %v1787 = vadd.f32 %v1531, %v1723
        %v1788 = vadd.f32 %v1532, %v1724
        %v1789 = vadd.f32 %v1533, %v1725
        %v1790 = vadd.f32 %v1534, %v1726
        %v1791 = vadd.f32 %v1535, %v1727
        %v1792 = vadd.f32 %v1536, %v1728
        %v1793 = vadd.f32 %v1537, %v1729
        %v1794 = vadd.f32 %v1538, %v1730
        %v1795 = vadd.f32 %v1539, %v1731
        %v1796 = vadd.f32 %v1540, %v1732
        %v1797 = vadd.f32 %v1541, %v1733
        %v1798 = vadd.f32 %v1542, %v1734
        %v1799 = vadd.f32 %v1543, %v1735
        %v1800 = vadd.f32 %v1544, %v1736
        %v1801 = vadd.f32 %v1545, %v1737
        %v1802 = vadd.f32 %v1546, %v1738
        %v1803 = vadd.f32 %v1547, %v1739
        %v1804 = vadd.f32 %v1548, %v1740
        %v1805 = vadd.f32 %v1549, %v1741
        %v1806 = vadd.f32 %v1550, %v1742
        %v1807 = vadd.f32 %v1551, %v1743
        %v1808 = vadd.f32 %v1552, %v1744
        %v1809 = vadd.f32 %v1553, %v1745
        %v1810 = vadd.f32 %v1554, %v1746
        %v1811 = vadd.f32 %v1555, %v1747
        %v1812 = vadd.f32 %v1556, %v1748
        %v1813 = vadd.f32 %v1557, %v1749
        %v1814 = vadd.f32 %v1558, %v1750
        %v1815 = vrcp.pop %v1783
        %v1816 = vrcp.pop %v1784
        %v1817 = vrcp.pop %v1785
        %v1818 = vrcp.pop %v1786
        %v1819 = vrcp.pop %v1787
        %v1820 = vrcp.pop %v1788
        %v1821 = vrcp.pop %v1789
        %v1822 = vrcp.pop %v1790
        %v1823 = vrcp.pop %v1791
        %v1824 = vrcp.pop %v1792
        %v1825 = vrcp.pop %v1793
        %v1826 = vrcp.pop %v1794
        %v1827 = vrcp.pop %v1795
        %v1828 = vrcp.pop %v1796
        %v1829 = vrcp.pop %v1797
        %v1830 = vrcp.pop %v1798
        %v1831 = vrcp.pop %v1799
        %v1832 = vrcp.pop %v1800
        %v1833 = vrcp.pop %v1801
        %v1834 = vrcp.pop %v1802
        %v1835 = vrcp.pop %v1803
        %v1836 = vrcp.pop %v1804
        %v1837 = vrcp.pop %v1805
        %v1838 = vrcp.pop %v1806
        %v1839 = vrcp.pop %v1807
        %v1840 = vrcp.pop %v1808
        %v1841 = vrcp.pop %v1809
        %v1842 = vrcp.pop %v1810
        %v1843 = vrcp.pop %v1811
        %v1844 = vrcp.pop %v1812
        %v1845 = vrcp.pop %v1813
        %v1846 = vrcp.pop %v1814
        %v1847 = vmul.f32 %v1751, %v1815
        %v1848 = vmul.f32 %v1752, %v1816
        %v1849 = vmul.f32 %v1753, %v1817
        %v1850 = vmul.f32 %v1754, %v1818
        %v1851 = vmul.f32 %v1755, %v1819
        %v1852 = vmul.f32 %v1756, %v1820
        %v1853 = vmul.f32 %v1757, %v1821
        %v1854 = vmul.f32 %v1758, %v1822
        %v1855 = vmul.f32 %v1759, %v1823
        %v1856 = vmul.f32 %v1760, %v1824
        %v1857 = vmul.f32 %v1761, %v1825
        %v1858 = vmul.f32 %v1762, %v1826
        %v1859 = vmul.f32 %v1763, %v1827
        %v1860 = vmul.f32 %v1764, %v1828
        %v1861 = vmul.f32 %v1765, %v1829
        %v1862 = vmul.f32 %v1766, %v1830
        %v1863 = vmul.f32 %v1767, %v1831
        %v1864 = vmul.f32 %v1768, %v1832
        %v1865 = vmul.f32 %v1769, %v1833
        %v1866 = vmul.f32 %v1770, %v1834
        %v1867 = vmul.f32 %v1771, %v1835
        %v1868 = vmul.f32 %v1772, %v1836
        %v1869 = vmul.f32 %v1773, %v1837
        %v1870 = vmul.f32 %v1774, %v1838
        %v1871 = vmul.f32 %v1775, %v1839
        %v1872 = vmul.f32 %v1776, %v1840
        %v1873 = vmul.f32 %v1777, %v1841
        %v1874 = vmul.f32 %v1778, %v1842
        %v1875 = vmul.f32 %v1779, %v1843
        %v1876 = vmul.f32 %v1780, %v1844
        %v1877 = vmul.f32 %v1781, %v1845
        %v1878 = vmul.f32 %v1782, %v1846
        %v1879 = vld [vmem:[%s346] sm:$0xff]
        %v1880 = vld [vmem:[%s346 + $0x8] sm:$0xff]
        %v1881 = vld [vmem:[%s346 + $0x10] sm:$0xff]
        %v1882 = vld [vmem:[%s346 + $0x18] sm:$0xff]
        %v1883 = vld [vmem:[%s346 + $0x20] sm:$0xff]
        %v1884 = vld [vmem:[%s346 + $0x28] sm:$0xff]
        %v1885 = vld [vmem:[%s346 + $0x30] sm:$0xff]
        %v1886 = vld [vmem:[%s346 + $0x38] sm:$0xff]
        %v1887 = vld [vmem:[%s346 + $0x40] sm:$0xff]
        %v1888 = vld [vmem:[%s346 + $0x48] sm:$0xff]
        %v1889 = vld [vmem:[%s346 + $0x50] sm:$0xff]
        %v1890 = vld [vmem:[%s346 + $0x58] sm:$0xff]
        %v1891 = vld [vmem:[%s346 + $0x60] sm:$0xff]
        %v1892 = vld [vmem:[%s346 + $0x68] sm:$0xff]
        %v1893 = vld [vmem:[%s346 + $0x70] sm:$0xff]
        %v1894 = vld [vmem:[%s346 + $0x78] sm:$0xff]
        %v1895 = vpack.c.bf16 %v1880, %v1879
        %v1896 = vpack.c.bf16 %v1882, %v1881
        %v1897 = vpack.c.bf16 %v1884, %v1883
        %v1898 = vpack.c.bf16 %v1886, %v1885
        %v1899 = vpack.c.bf16 %v1888, %v1887
        %v1900 = vpack.c.bf16 %v1890, %v1889
        %v1901 = vpack.c.bf16 %v1892, %v1891
        %v1902 = vpack.c.bf16 %v1894, %v1893
        %v1903 = vld [vmem:[%s4] sm:$0xf]
        %v1904 = vld [vmem:[%s4 + $0x4] sm:$0xf]
        %v1905 = vld [vmem:[%s4 + $0x8] sm:$0xf]
        %v1906 = vld [vmem:[%s4 + $0xc] sm:$0xf]
        %v1907 = vld [vmem:[%s4 + $0x10] sm:$0xf]
        %v1908 = vld [vmem:[%s4 + $0x14] sm:$0xf]
        %v1909 = vld [vmem:[%s4 + $0x18] sm:$0xf]
        %v1910 = vld [vmem:[%s4 + $0x1c] sm:$0xf]
        %v1911 = vld [vmem:[%s5] sm:$0x1]
        %v1913 = vlaneseq
        %v1914 = vshrl.u32 %v1913, 7
        %v1915 = vsub.s32 0, %v1914
        %v1916 = vrot.slane %v1911, %v1915
        %v1926 = vunpack.c.l.b16 %v1903
        %v1927 = vunpack.c.l.b16 %v1904
        %v1928 = vunpack.c.l.b16 %v1905
        %v1929 = vunpack.c.l.b16 %v1906
        %v1930 = vunpack.c.l.b16 %v1907
        %v1931 = vunpack.c.l.b16 %v1908
        %v1932 = vunpack.c.l.b16 %v1909
        %v1933 = vunpack.c.l.b16 %v1910
        %v1934 = vpack.c.b16 %v1927, %v1926
        %v1935 = vpack.c.b16 %v1929, %v1928
        %v1936 = vpack.c.b16 %v1931, %v1930
        %v1937 = vpack.c.b16 %v1933, %v1932
        %vm1942 = vcmask 523264
        %v1944 = vsel %vm1942, %v1895, 0
        %v1947 = vsel %vm1942, %v1896, 0
        %v1950 = vsel %vm1942, %v1897, 0
        %v1953 = vsel %vm1942, %v1898, 0
        %v1956 = vsel %vm1942, %v1899, 0
        %v1959 = vsel %vm1942, %v1900, 0
        %v1962 = vsel %vm1942, %v1901, 0
        %v1965 = vsel %vm1942, %v1902, 0
        %1967 = vmatprep.subr.bf16.mxu0 0
        %1968 = vmatpush1.bf16.msra.mxu0 %v1934
        %1969 = vmatprep.subr.bf16.mxu0 0
        %1970 = vmatpush1.bf16.msra.mxu0 %v1935
        %1971 = vmatprep.subr.bf16.mxu0 0
        %1972 = vmatpush1.bf16.msra.mxu0 %v1936
        %1973 = vmatprep.subr.bf16.mxu0 0
        %1974 = vmatpush1.bf16.msra.mxu0 %v1937
        %1975 = vmatprep.subr.bf16.mxu0 0
        %1976 = vmatpush1.bf16.msra.mxu0 0
        %1977 = vmatprep.subr.bf16.mxu0 0
        %1978 = vmatpush1.bf16.msra.mxu0 0
        %1979 = vmatprep.subr.bf16.mxu0 0
        %1980 = vmatpush1.bf16.msra.mxu0 0
        %1981 = vmatprep.subr.bf16.mxu0 0
        %1982 = vmatpush1.bf16.msra.mxu0 0
        %1983 = vmatprep.subr.bf16.mxu0 0
        %1984 = vmatpush1.bf16.msra.mxu0 0
        %1985 = vmatprep.subr.bf16.mxu0 0
        %1986 = vmatpush1.bf16.msra.mxu0 0
        %1987 = vmatprep.subr.bf16.mxu0 0
        %1988 = vmatpush1.bf16.msra.mxu0 0
        %1989 = vmatprep.subr.bf16.mxu0 0
        %1990 = vmatpush1.bf16.msra.mxu0 0
        %1991 = vmatprep.subr.bf16.mxu0 0
        %1992 = vmatpush1.bf16.msra.mxu0 0
        %1993 = vmatprep.subr.bf16.mxu0 0
        %1994 = vmatpush1.bf16.msra.mxu0 0
        %1995 = vmatprep.subr.bf16.mxu0 0
        %1996 = vmatpush1.bf16.msra.mxu0 0
        %1997 = vmatprep.subr.bf16.mxu0 0
        %1998 = vmatpush1.bf16.msra.mxu0 0
        %1999 = vmatprep.mubr.bf16.mxu0 0
        %2000 = vmatmul.mubr.bf16.gmra.mrb[0].mxu0 %v1944
        %v2001 = vpop.f32.mrb[0].mxu0
        %v2002 = vadd.f32 %v1916, %v2001
        %v2003 = vpop.f32.mrb[0].mxu0
        %v2004 = vpop.f32.mrb[0].mxu0
        %v2005 = vadd.f32 %v1916, %v2004
        %v2006 = vpop.f32.mrb[0].mxu0
        %2007 = vmatprep.mubr.bf16.mxu0 0
        %2008 = vmatmul.mubr.bf16.gmra.mrb[0].mxu0 %v1947
        %v2009 = vpop.f32.mrb[0].mxu0
        %v2010 = vadd.f32 %v1916, %v2009
        %v2011 = vpop.f32.mrb[0].mxu0
        %v2012 = vpop.f32.mrb[0].mxu0
        %v2013 = vadd.f32 %v1916, %v2012
        %v2014 = vpop.f32.mrb[0].mxu0
        %2015 = vmatprep.mubr.bf16.mxu0 0
        %2016 = vmatmul.mubr.bf16.gmra.mrb[0].mxu0 %v1950
        %v2017 = vpop.f32.mrb[0].mxu0
        %v2018 = vadd.f32 %v1916, %v2017
        %v2019 = vpop.f32.mrb[0].mxu0
        %v2020 = vpop.f32.mrb[0].mxu0
        %v2021 = vadd.f32 %v1916, %v2020
        %v2022 = vpop.f32.mrb[0].mxu0
        %2023 = vmatprep.mubr.bf16.mxu0 0
        %2024 = vmatmul.mubr.bf16.gmra.mrb[0].mxu0 %v1953
        %v2025 = vpop.f32.mrb[0].mxu0
        %v2026 = vadd.f32 %v1916, %v2025
        %v2027 = vpop.f32.mrb[0].mxu0
        %v2028 = vpop.f32.mrb[0].mxu0
        %v2029 = vadd.f32 %v1916, %v2028
        %v2030 = vpop.f32.mrb[0].mxu0
        %2031 = vmatprep.mubr.bf16.mxu0 0
        %2032 = vmatmul.mubr.bf16.gmra.mrb[0].mxu0 %v1956
        %v2033 = vpop.f32.mrb[0].mxu0
        %v2034 = vadd.f32 %v1916, %v2033
        %v2035 = vpop.f32.mrb[0].mxu0
        %v2036 = vpop.f32.mrb[0].mxu0
        %v2037 = vadd.f32 %v1916, %v2036
        %v2038 = vpop.f32.mrb[0].mxu0
        %2039 = vmatprep.mubr.bf16.mxu0 0
        %2040 = vmatmul.mubr.bf16.gmra.mrb[0].mxu0 %v1959
        %v2041 = vpop.f32.mrb[0].mxu0
        %v2042 = vadd.f32 %v1916, %v2041
        %v2043 = vpop.f32.mrb[0].mxu0
        %v2044 = vpop.f32.mrb[0].mxu0
        %v2045 = vadd.f32 %v1916, %v2044
        %v2046 = vpop.f32.mrb[0].mxu0
        %2047 = vmatprep.mubr.bf16.mxu0 0
        %2048 = vmatmul.mubr.bf16.gmra.mrb[0].mxu0 %v1962
        %v2049 = vpop.f32.mrb[0].mxu0
        %v2050 = vadd.f32 %v1916, %v2049
        %v2051 = vpop.f32.mrb[0].mxu0
        %v2052 = vpop.f32.mrb[0].mxu0
        %v2053 = vadd.f32 %v1916, %v2052
        %v2054 = vpop.f32.mrb[0].mxu0
        %2055 = vmatprep.mubr.bf16.mxu0 0
        %2056 = vmatmul.mubr.bf16.gmra.mrb[0].mxu0 %v1965
        %v2057 = vpop.f32.mrb[0].mxu0
        %v2058 = vadd.f32 %v1916, %v2057
        %v2059 = vpop.f32.mrb[0].mxu0
        %v2060 = vpop.f32.mrb[0].mxu0
        %v2061 = vadd.f32 %v1916, %v2060
        %v2062 = vpop.f32.mrb[0].mxu0
        %2063 = vdwg.mxu0
        %v2064 = vmax.f32 %v2002, 0.0
        %v2065 = vmax.f32 %v2005, 0.0
        %v2066 = vmax.f32 %v2010, 0.0
        %v2067 = vmax.f32 %v2013, 0.0
        %v2068 = vmax.f32 %v2018, 0.0
        %v2069 = vmax.f32 %v2021, 0.0
        %v2070 = vmax.f32 %v2026, 0.0
        %v2071 = vmax.f32 %v2029, 0.0
        %v2072 = vmax.f32 %v2034, 0.0
        %v2073 = vmax.f32 %v2037, 0.0
        %v2074 = vmax.f32 %v2042, 0.0
        %v2075 = vmax.f32 %v2045, 0.0
        %v2076 = vmax.f32 %v2050, 0.0
        %v2077 = vmax.f32 %v2053, 0.0
        %v2078 = vmax.f32 %v2058, 0.0
        %v2079 = vmax.f32 %v2061, 0.0
        %v2080 = vpack.c.bf16 %v1848, %v1847
        %v2081 = vpack.c.bf16 %v1850, %v1849
        %v2082 = vpack.c.bf16 %v1852, %v1851
        %v2083 = vpack.c.bf16 %v1854, %v1853
        %v2084 = vpack.c.bf16 %v1856, %v1855
        %v2085 = vpack.c.bf16 %v1858, %v1857
        %v2086 = vpack.c.bf16 %v1860, %v1859
        %v2087 = vpack.c.bf16 %v1862, %v1861
        %v2088 = vpack.c.bf16 %v1864, %v1863
        %v2089 = vpack.c.bf16 %v1866, %v1865
        %v2090 = vpack.c.bf16 %v1868, %v1867
        %v2091 = vpack.c.bf16 %v1870, %v1869
        %v2092 = vpack.c.bf16 %v1872, %v1871
        %v2093 = vpack.c.bf16 %v1874, %v1873
        %v2094 = vpack.c.bf16 %v1876, %v1875
        %v2095 = vpack.c.bf16 %v1878, %v1877
        %v2096 = vpack.c.bf16 %v2065, %v2064
        %v2097 = vpack.c.bf16 %v2067, %v2066
        %v2098 = vpack.c.bf16 %v2069, %v2068
        %v2099 = vpack.c.bf16 %v2071, %v2070
        %v2100 = vpack.c.bf16 %v2073, %v2072
        %v2101 = vpack.c.bf16 %v2075, %v2074
        %v2102 = vpack.c.bf16 %v2077, %v2076
        %v2103 = vpack.c.bf16 %v2079, %v2078
        %v2104 = vld [vmem:[%s351] sm:$0xff]
        %v2105 = vld [vmem:[%s351 + $0x8] sm:$0xff]
        %v2106 = vld [vmem:[%s351 + $0x10] sm:$0xff]
        %v2107 = vld [vmem:[%s351 + $0x18] sm:$0xff]
        %v2108 = vld [vmem:[%s351 + $0x20] sm:$0xff]
        %v2109 = vld [vmem:[%s351 + $0x28] sm:$0xff]
        %v2110 = vld [vmem:[%s351 + $0x30] sm:$0xff]
        %v2111 = vld [vmem:[%s351 + $0x38] sm:$0xff]
        %v2112 = vld [vmem:[%s351 + $0x40] sm:$0xff]
        %v2113 = vld [vmem:[%s351 + $0x48] sm:$0xff]
        %v2114 = vld [vmem:[%s351 + $0x50] sm:$0xff]
        %v2115 = vld [vmem:[%s351 + $0x58] sm:$0xff]
        %v2116 = vld [vmem:[%s351 + $0x60] sm:$0xff]
        %v2117 = vld [vmem:[%s351 + $0x68] sm:$0xff]
        %v2118 = vld [vmem:[%s351 + $0x70] sm:$0xff]
        %v2119 = vld [vmem:[%s351 + $0x78] sm:$0xff]
        %v2120 = vld [vmem:[%s351 + $0x80] sm:$0xff]
        %v2121 = vld [vmem:[%s351 + $0x88] sm:$0xff]
        %v2122 = vld [vmem:[%s351 + $0x90] sm:$0xff]
        %v2123 = vld [vmem:[%s351 + $0x98] sm:$0xff]
        %v2124 = vld [vmem:[%s351 + $0xa0] sm:$0xff]
        %v2125 = vld [vmem:[%s351 + $0xa8] sm:$0xff]
        %v2126 = vld [vmem:[%s351 + $0xb0] sm:$0xff]
        %v2127 = vld [vmem:[%s351 + $0xb8] sm:$0xff]
        %v2128 = vld [vmem:[%s351 + $0xc0] sm:$0xff]
        %v2129 = vld [vmem:[%s351 + $0xc8] sm:$0xff]
        %v2130 = vld [vmem:[%s351 + $0xd0] sm:$0xff]
        %v2131 = vld [vmem:[%s351 + $0xd8] sm:$0xff]
        %v2132 = vld [vmem:[%s351 + $0xe0] sm:$0xff]
        %v2133 = vld [vmem:[%s351 + $0xe8] sm:$0xff]
        %v2134 = vld [vmem:[%s351 + $0xf0] sm:$0xff]
        %v2135 = vld [vmem:[%s351 + $0xf8] sm:$0xff]
        %v2136 = vpack.c.bf16 %v2105, %v2104
        %v2137 = vpack.c.bf16 %v2107, %v2106
        %v2138 = vpack.c.bf16 %v2109, %v2108
        %v2139 = vpack.c.bf16 %v2111, %v2110
        %v2140 = vpack.c.bf16 %v2113, %v2112
        %v2141 = vpack.c.bf16 %v2115, %v2114
        %v2142 = vpack.c.bf16 %v2117, %v2116
        %v2143 = vpack.c.bf16 %v2119, %v2118
        %v2144 = vpack.c.bf16 %v2121, %v2120
        %v2145 = vpack.c.bf16 %v2123, %v2122
        %v2146 = vpack.c.bf16 %v2125, %v2124
        %v2147 = vpack.c.bf16 %v2127, %v2126
        %v2148 = vpack.c.bf16 %v2129, %v2128
        %v2149 = vpack.c.bf16 %v2131, %v2130
        %v2150 = vpack.c.bf16 %v2133, %v2132
        %v2151 = vpack.c.bf16 %v2135, %v2134
        %v2152 = vld [vmem:[%s6] sm:$0xf]
        %v2153 = vld [vmem:[%s6 + $0x4] sm:$0xf]
        %v2154 = vld [vmem:[%s6 + $0x8] sm:$0xf]
        %v2155 = vld [vmem:[%s6 + $0xc] sm:$0xf]
        %v2156 = vld [vmem:[%s6 + $0x10] sm:$0xf]
        %v2157 = vld [vmem:[%s6 + $0x14] sm:$0xf]
        %v2158 = vld [vmem:[%s6 + $0x18] sm:$0xf]
        %v2159 = vld [vmem:[%s6 + $0x1c] sm:$0xf]
        %v2160 = vld [vmem:[%s7] sm:$0x1]
        %v2162 = vlaneseq
        %v2163 = vshrl.u32 %v2162, 7
        %v2164 = vsub.s32 0, %v2163
        %v2165 = vrot.slane %v2160, %v2164
        %v2175 = vunpack.c.l.b16 %v2152
        %v2176 = vunpack.c.l.b16 %v2153
        %v2177 = vunpack.c.l.b16 %v2154
        %v2178 = vunpack.c.l.b16 %v2155
        %v2179 = vunpack.c.l.b16 %v2156
        %v2180 = vunpack.c.l.b16 %v2157
        %v2181 = vunpack.c.l.b16 %v2158
        %v2182 = vunpack.c.l.b16 %v2159
        %v2183 = vpack.c.b16 %v2176, %v2175
        %v2184 = vpack.c.b16 %v2178, %v2177
        %v2185 = vpack.c.b16 %v2180, %v2179
        %v2186 = vpack.c.b16 %v2182, %v2181
        %v2192 = vsel %vm1942, %v2136, 0
        %v2195 = vsel %vm1942, %v2137, 0
        %v2198 = vsel %vm1942, %v2138, 0
        %v2201 = vsel %vm1942, %v2139, 0
        %v2204 = vsel %vm1942, %v2140, 0
        %v2207 = vsel %vm1942, %v2141, 0
        %v2210 = vsel %vm1942, %v2142, 0
        %v2213 = vsel %vm1942, %v2143, 0
        %v2216 = vsel %vm1942, %v2144, 0
        %v2219 = vsel %vm1942, %v2145, 0
        %v2222 = vsel %vm1942, %v2146, 0
        %v2225 = vsel %vm1942, %v2147, 0
        %v2228 = vsel %vm1942, %v2148, 0
        %v2231 = vsel %vm1942, %v2149, 0
        %v2234 = vsel %vm1942, %v2150, 0
        %v2237 = vsel %vm1942, %v2151, 0
        %2239 = vmatprep.subr.bf16.mxu0 0
        %2240 = vmatpush1.bf16.msra.mxu0 %v2183
        %2241 = vmatprep.subr.bf16.mxu0 0
        %2242 = vmatpush1.bf16.msra.mxu0 %v2184
        %2243 = vmatprep.subr.bf16.mxu0 0
        %2244 = vmatpush1.bf16.msra.mxu0 %v2185
        %2245 = vmatprep.subr.bf16.mxu0 0
        %2246 = vmatpush1.bf16.msra.mxu0 %v2186
        %2247 = vmatprep.subr.bf16.mxu0 0
        %2248 = vmatpush1.bf16.msra.mxu0 0
        %2249 = vmatprep.subr.bf16.mxu0 0
        %2250 = vmatpush1.bf16.msra.mxu0 0
        %2251 = vmatprep.subr.bf16.mxu0 0
        %2252 = vmatpush1.bf16.msra.mxu0 0
        %2253 = vmatprep.subr.bf16.mxu0 0
        %2254 = vmatpush1.bf16.msra.mxu0 0
        %2255 = vmatprep.subr.bf16.mxu0 0
        %2256 = vmatpush1.bf16.msra.mxu0 0
        %2257 = vmatprep.subr.bf16.mxu0 0
        %2258 = vmatpush1.bf16.msra.mxu0 0
        %2259 = vmatprep.subr.bf16.mxu0 0
        %2260 = vmatpush1.bf16.msra.mxu0 0
        %2261 = vmatprep.subr.bf16.mxu0 0
        %2262 = vmatpush1.bf16.msra.mxu0 0
        %2263 = vmatprep.subr.bf16.mxu0 0
        %2264 = vmatpush1.bf16.msra.mxu0 0
        %2265 = vmatprep.subr.bf16.mxu0 0
        %2266 = vmatpush1.bf16.msra.mxu0 0
        %2267 = vmatprep.subr.bf16.mxu0 0
        %2268 = vmatpush1.bf16.msra.mxu0 0
        %2269 = vmatprep.subr.bf16.mxu0 0
        %2270 = vmatpush1.bf16.msra.mxu0 0
        %2271 = vmatprep.mubr.bf16.mxu0 0
        %2272 = vmatmul.mubr.bf16.gmra.mrb[0].mxu0 %v2192
        %v2273 = vpop.f32.mrb[0].mxu0
        %v2274 = vadd.f32 %v2165, %v2273
        %v2275 = vpop.f32.mrb[0].mxu0
        %v2276 = vpop.f32.mrb[0].mxu0
        %v2277 = vadd.f32 %v2165, %v2276
        %v2278 = vpop.f32.mrb[0].mxu0
        %2279 = vmatprep.mubr.bf16.mxu0 0
        %2280 = vmatmul.mubr.bf16.gmra.mrb[0].mxu0 %v2195
        %v2281 = vpop.f32.mrb[0].mxu0
        %v2282 = vadd.f32 %v2165, %v2281
        %v2283 = vpop.f32.mrb[0].mxu0
        %v2284 = vpop.f32.mrb[0].mxu0
        %v2285 = vadd.f32 %v2165, %v2284
        %v2286 = vpop.f32.mrb[0].mxu0
        %2287 = vmatprep.mubr.bf16.mxu0 0
        %2288 = vmatmul.mubr.bf16.gmra.mrb[0].mxu0 %v2198
        %v2289 = vpop.f32.mrb[0].mxu0
        %v2290 = vadd.f32 %v2165, %v2289
        %v2291 = vpop.f32.mrb[0].mxu0
        %v2292 = vpop.f32.mrb[0].mxu0
        %v2293 = vadd.f32 %v2165, %v2292
        %v2294 = vpop.f32.mrb[0].mxu0
        %2295 = vmatprep.mubr.bf16.mxu0 0
        %2296 = vmatmul.mubr.bf16.gmra.mrb[0].mxu0 %v2201
        %v2297 = vpop.f32.mrb[0].mxu0
        %v2298 = vadd.f32 %v2165, %v2297
        %v2299 = vpop.f32.mrb[0].mxu0
        %v2300 = vpop.f32.mrb[0].mxu0
        %v2301 = vadd.f32 %v2165, %v2300
        %v2302 = vpop.f32.mrb[0].mxu0
        %2303 = vmatprep.mubr.bf16.mxu0 0
        %2304 = vmatmul.mubr.bf16.gmra.mrb[0].mxu0 %v2204
        %v2305 = vpop.f32.mrb[0].mxu0
        %v2306 = vadd.f32 %v2165, %v2305
        %v2307 = vpop.f32.mrb[0].mxu0
        %v2308 = vpop.f32.mrb[0].mxu0
        %v2309 = vadd.f32 %v2165, %v2308
        %v2310 = vpop.f32.mrb[0].mxu0
        %2311 = vmatprep.mubr.bf16.mxu0 0
        %2312 = vmatmul.mubr.bf16.gmra.mrb[0].mxu0 %v2207
        %v2313 = vpop.f32.mrb[0].mxu0
        %v2314 = vadd.f32 %v2165, %v2313
        %v2315 = vpop.f32.mrb[0].mxu0
        %v2316 = vpop.f32.mrb[0].mxu0
        %v2317 = vadd.f32 %v2165, %v2316
        %v2318 = vpop.f32.mrb[0].mxu0
        %2319 = vmatprep.mubr.bf16.mxu0 0
        %2320 = vmatmul.mubr.bf16.gmra.mrb[0].mxu0 %v2210
        %v2321 = vpop.f32.mrb[0].mxu0
        %v2322 = vadd.f32 %v2165, %v2321
        %v2323 = vpop.f32.mrb[0].mxu0
        %v2324 = vpop.f32.mrb[0].mxu0
        %v2325 = vadd.f32 %v2165, %v2324
        %v2326 = vpop.f32.mrb[0].mxu0
        %2327 = vmatprep.mubr.bf16.mxu0 0
        %2328 = vmatmul.mubr.bf16.gmra.mrb[0].mxu0 %v2213
        %v2329 = vpop.f32.mrb[0].mxu0
        %v2330 = vadd.f32 %v2165, %v2329
        %v2331 = vpop.f32.mrb[0].mxu0
        %v2332 = vpop.f32.mrb[0].mxu0
        %v2333 = vadd.f32 %v2165, %v2332
        %v2334 = vpop.f32.mrb[0].mxu0
        %2335 = vmatprep.mubr.bf16.mxu0 0
        %2336 = vmatmul.mubr.bf16.gmra.mrb[0].mxu0 %v2216
        %v2337 = vpop.f32.mrb[0].mxu0
        %v2338 = vadd.f32 %v2165, %v2337
        %v2339 = vpop.f32.mrb[0].mxu0
        %v2340 = vpop.f32.mrb[0].mxu0
        %v2341 = vadd.f32 %v2165, %v2340
        %v2342 = vpop.f32.mrb[0].mxu0
        %2343 = vmatprep.mubr.bf16.mxu0 0
        %2344 = vmatmul.mubr.bf16.gmra.mrb[0].mxu0 %v2219
        %v2345 = vpop.f32.mrb[0].mxu0
        %v2346 = vadd.f32 %v2165, %v2345
        %v2347 = vpop.f32.mrb[0].mxu0
        %v2348 = vpop.f32.mrb[0].mxu0
        %v2349 = vadd.f32 %v2165, %v2348
        %v2350 = vpop.f32.mrb[0].mxu0
        %2351 = vmatprep.mubr.bf16.mxu0 0
        %2352 = vmatmul.mubr.bf16.gmra.mrb[0].mxu0 %v2222
        %v2353 = vpop.f32.mrb[0].mxu0
        %v2354 = vadd.f32 %v2165, %v2353
        %v2355 = vpop.f32.mrb[0].mxu0
        %v2356 = vpop.f32.mrb[0].mxu0
        %v2357 = vadd.f32 %v2165, %v2356
        %v2358 = vpop.f32.mrb[0].mxu0
        %2359 = vmatprep.mubr.bf16.mxu0 0
        %2360 = vmatmul.mubr.bf16.gmra.mrb[0].mxu0 %v2225
        %v2361 = vpop.f32.mrb[0].mxu0
        %v2362 = vadd.f32 %v2165, %v2361
        %v2363 = vpop.f32.mrb[0].mxu0
        %v2364 = vpop.f32.mrb[0].mxu0
        %v2365 = vadd.f32 %v2165, %v2364
        %v2366 = vpop.f32.mrb[0].mxu0
        %2367 = vmatprep.mubr.bf16.mxu0 0
        %2368 = vmatmul.mubr.bf16.gmra.mrb[0].mxu0 %v2228
        %v2369 = vpop.f32.mrb[0].mxu0
        %v2370 = vadd.f32 %v2165, %v2369
        %v2371 = vpop.f32.mrb[0].mxu0
        %v2372 = vpop.f32.mrb[0].mxu0
        %v2373 = vadd.f32 %v2165, %v2372
        %v2374 = vpop.f32.mrb[0].mxu0
        %2375 = vmatprep.mubr.bf16.mxu0 0
        %2376 = vmatmul.mubr.bf16.gmra.mrb[0].mxu0 %v2231
        %v2377 = vpop.f32.mrb[0].mxu0
        %v2378 = vadd.f32 %v2165, %v2377
        %v2379 = vpop.f32.mrb[0].mxu0
        %v2380 = vpop.f32.mrb[0].mxu0
        %v2381 = vadd.f32 %v2165, %v2380
        %v2382 = vpop.f32.mrb[0].mxu0
        %2383 = vmatprep.mubr.bf16.mxu0 0
        %2384 = vmatmul.mubr.bf16.gmra.mrb[0].mxu0 %v2234
        %v2385 = vpop.f32.mrb[0].mxu0
        %v2386 = vadd.f32 %v2165, %v2385
        %v2387 = vpop.f32.mrb[0].mxu0
        %v2388 = vpop.f32.mrb[0].mxu0
        %v2389 = vadd.f32 %v2165, %v2388
        %v2390 = vpop.f32.mrb[0].mxu0
        %2391 = vmatprep.mubr.bf16.mxu0 0
        %2392 = vmatmul.mubr.bf16.gmra.mrb[0].mxu0 %v2237
        %v2393 = vpop.f32.mrb[0].mxu0
        %v2394 = vadd.f32 %v2165, %v2393
        %v2395 = vpop.f32.mrb[0].mxu0
        %v2396 = vpop.f32.mrb[0].mxu0
        %v2397 = vadd.f32 %v2165, %v2396
        %v2398 = vpop.f32.mrb[0].mxu0
        %2399 = vdwg.mxu0
        %v2400 = vmax.f32 %v2274, 0.0
        %v2401 = vmax.f32 %v2277, 0.0
        %v2402 = vmax.f32 %v2282, 0.0
        %v2403 = vmax.f32 %v2285, 0.0
        %v2404 = vmax.f32 %v2290, 0.0
        %v2405 = vmax.f32 %v2293, 0.0
        %v2406 = vmax.f32 %v2298, 0.0
        %v2407 = vmax.f32 %v2301, 0.0
        %v2408 = vmax.f32 %v2306, 0.0
        %v2409 = vmax.f32 %v2309, 0.0
        %v2410 = vmax.f32 %v2314, 0.0
        %v2411 = vmax.f32 %v2317, 0.0
        %v2412 = vmax.f32 %v2322, 0.0
        %v2413 = vmax.f32 %v2325, 0.0
        %v2414 = vmax.f32 %v2330, 0.0
        %v2415 = vmax.f32 %v2333, 0.0
        %v2416 = vmax.f32 %v2338, 0.0
        %v2417 = vmax.f32 %v2341, 0.0
        %v2418 = vmax.f32 %v2346, 0.0
        %v2419 = vmax.f32 %v2349, 0.0
        %v2420 = vmax.f32 %v2354, 0.0
        %v2421 = vmax.f32 %v2357, 0.0
        %v2422 = vmax.f32 %v2362, 0.0
        %v2423 = vmax.f32 %v2365, 0.0
        %v2424 = vmax.f32 %v2370, 0.0
        %v2425 = vmax.f32 %v2373, 0.0
        %v2426 = vmax.f32 %v2378, 0.0
        %v2427 = vmax.f32 %v2381, 0.0
        %v2428 = vmax.f32 %v2386, 0.0
        %v2429 = vmax.f32 %v2389, 0.0
        %v2430 = vmax.f32 %v2394, 0.0
        %v2431 = vmax.f32 %v2397, 0.0
        %2432 = vmatprep.subr.bf16.mxu0 0
        %2433 = vmatpush1.bf16.msra.mxu0 %v2096
        %2434 = vmatprep.subr.bf16.mxu0 0
        %2435 = vmatpush1.bf16.msra.mxu0 %v2097
        %2436 = vmatprep.subr.bf16.mxu0 0
        %2437 = vmatpush1.bf16.msra.mxu0 %v2098
        %2438 = vmatprep.subr.bf16.mxu0 0
        %2439 = vmatpush1.bf16.msra.mxu0 %v2099
        %2440 = vmatprep.subr.bf16.mxu0 0
        %2441 = vmatpush1.bf16.msra.mxu0 %v2100
        %2442 = vmatprep.subr.bf16.mxu0 0
        %2443 = vmatpush1.bf16.msra.mxu0 %v2101
        %2444 = vmatprep.subr.bf16.mxu0 0
        %2445 = vmatpush1.bf16.msra.mxu0 %v2102
        %2446 = vmatprep.subr.bf16.mxu0 0
        %2447 = vmatpush1.bf16.msra.mxu0 %v2103
        %2448 = vmatprep.subr.bf16.mxu0 0
        %2449 = vmatpush1.bf16.msra.mxu0 0
        %2450 = vmatprep.subr.bf16.mxu0 0
        %2451 = vmatpush1.bf16.msra.mxu0 0
        %2452 = vmatprep.subr.bf16.mxu0 0
        %2453 = vmatpush1.bf16.msra.mxu0 0
        %2454 = vmatprep.subr.bf16.mxu0 0
        %2455 = vmatpush1.bf16.msra.mxu0 0
        %2456 = vmatprep.subr.bf16.mxu0 0
        %2457 = vmatpush1.bf16.msra.mxu0 0
        %2458 = vmatprep.subr.bf16.mxu0 0
        %2459 = vmatpush1.bf16.msra.mxu0 0
        %2460 = vmatprep.subr.bf16.mxu0 0
        %2461 = vmatpush1.bf16.msra.mxu0 0
        %2462 = vmatprep.subr.bf16.mxu0 0
        %2463 = vmatpush1.bf16.msra.mxu0 0
        %2464 = vmatprep.mubr.bf16.mxu0 0
        %2465 = vmatmul.mubr.bf16.gmra.mrb[0].mxu0 %v2080
        %v2466 = vpop.f32.mrb[0].mxu0
        %v2467 = vadd.f32 %v2400, %v2466
        %v2468 = vpop.f32.mrb[0].mxu0
        %v2469 = vpop.f32.mrb[0].mxu0
        %v2470 = vadd.f32 %v2401, %v2469
        %v2471 = vpop.f32.mrb[0].mxu0
        %2472 = vmatprep.mubr.bf16.mxu0 0
        %2473 = vmatmul.mubr.bf16.gmra.mrb[0].mxu0 %v2081
        %v2474 = vpop.f32.mrb[0].mxu0
        %v2475 = vadd.f32 %v2402, %v2474
        %v2476 = vpop.f32.mrb[0].mxu0
        %v2477 = vpop.f32.mrb[0].mxu0
        %v2478 = vadd.f32 %v2403, %v2477
        %v2479 = vpop.f32.mrb[0].mxu0
        %2480 = vmatprep.mubr.bf16.mxu0 0
        %2481 = vmatmul.mubr.bf16.gmra.mrb[0].mxu0 %v2082
        %v2482 = vpop.f32.mrb[0].mxu0
        %v2483 = vadd.f32 %v2404, %v2482
        %v2484 = vpop.f32.mrb[0].mxu0
        %v2485 = vpop.f32.mrb[0].mxu0
        %v2486 = vadd.f32 %v2405, %v2485
        %v2487 = vpop.f32.mrb[0].mxu0
        %2488 = vmatprep.mubr.bf16.mxu0 0
        %2489 = vmatmul.mubr.bf16.gmra.mrb[0].mxu0 %v2083
        %v2490 = vpop.f32.mrb[0].mxu0
        %v2491 = vadd.f32 %v2406, %v2490
        %v2492 = vpop.f32.mrb[0].mxu0
        %v2493 = vpop.f32.mrb[0].mxu0
        %v2494 = vadd.f32 %v2407, %v2493
        %v2495 = vpop.f32.mrb[0].mxu0
        %2496 = vmatprep.mubr.bf16.mxu0 0
        %2497 = vmatmul.mubr.bf16.gmra.mrb[0].mxu0 %v2084
        %v2498 = vpop.f32.mrb[0].mxu0
        %v2499 = vadd.f32 %v2408, %v2498
        %v2500 = vpop.f32.mrb[0].mxu0
        %v2501 = vpop.f32.mrb[0].mxu0
        %v2502 = vadd.f32 %v2409, %v2501
        %v2503 = vpop.f32.mrb[0].mxu0
        %2504 = vmatprep.mubr.bf16.mxu0 0
        %2505 = vmatmul.mubr.bf16.gmra.mrb[0].mxu0 %v2085
        %v2506 = vpop.f32.mrb[0].mxu0
        %v2507 = vadd.f32 %v2410, %v2506
        %v2508 = vpop.f32.mrb[0].mxu0
        %v2509 = vpop.f32.mrb[0].mxu0
        %v2510 = vadd.f32 %v2411, %v2509
        %v2511 = vpop.f32.mrb[0].mxu0
        %2512 = vmatprep.mubr.bf16.mxu0 0
        %2513 = vmatmul.mubr.bf16.gmra.mrb[0].mxu0 %v2086
        %v2514 = vpop.f32.mrb[0].mxu0
        %v2515 = vadd.f32 %v2412, %v2514
        %v2516 = vpop.f32.mrb[0].mxu0
        %v2517 = vpop.f32.mrb[0].mxu0
        %v2518 = vadd.f32 %v2413, %v2517
        %v2519 = vpop.f32.mrb[0].mxu0
        %2520 = vmatprep.mubr.bf16.mxu0 0
        %2521 = vmatmul.mubr.bf16.gmra.mrb[0].mxu0 %v2087
        %v2522 = vpop.f32.mrb[0].mxu0
        %v2523 = vadd.f32 %v2414, %v2522
        %v2524 = vpop.f32.mrb[0].mxu0
        %v2525 = vpop.f32.mrb[0].mxu0
        %v2526 = vadd.f32 %v2415, %v2525
        %v2527 = vpop.f32.mrb[0].mxu0
        %2528 = vmatprep.mubr.bf16.mxu0 0
        %2529 = vmatmul.mubr.bf16.gmra.mrb[0].mxu0 %v2088
        %v2530 = vpop.f32.mrb[0].mxu0
        %v2531 = vadd.f32 %v2416, %v2530
        %v2532 = vpop.f32.mrb[0].mxu0
        %v2533 = vpop.f32.mrb[0].mxu0
        %v2534 = vadd.f32 %v2417, %v2533
        %v2535 = vpop.f32.mrb[0].mxu0
        %2536 = vmatprep.mubr.bf16.mxu0 0
        %2537 = vmatmul.mubr.bf16.gmra.mrb[0].mxu0 %v2089
        %v2538 = vpop.f32.mrb[0].mxu0
        %v2539 = vadd.f32 %v2418, %v2538
        %v2540 = vpop.f32.mrb[0].mxu0
        %v2541 = vpop.f32.mrb[0].mxu0
        %v2542 = vadd.f32 %v2419, %v2541
        %v2543 = vpop.f32.mrb[0].mxu0
        %2544 = vmatprep.mubr.bf16.mxu0 0
        %2545 = vmatmul.mubr.bf16.gmra.mrb[0].mxu0 %v2090
        %v2546 = vpop.f32.mrb[0].mxu0
        %v2547 = vadd.f32 %v2420, %v2546
        %v2548 = vpop.f32.mrb[0].mxu0
        %v2549 = vpop.f32.mrb[0].mxu0
        %v2550 = vadd.f32 %v2421, %v2549
        %v2551 = vpop.f32.mrb[0].mxu0
        %2552 = vmatprep.mubr.bf16.mxu0 0
        %2553 = vmatmul.mubr.bf16.gmra.mrb[0].mxu0 %v2091
        %v2554 = vpop.f32.mrb[0].mxu0
        %v2555 = vadd.f32 %v2422, %v2554
        %v2556 = vpop.f32.mrb[0].mxu0
        %v2557 = vpop.f32.mrb[0].mxu0
        %v2558 = vadd.f32 %v2423, %v2557
        %v2559 = vpop.f32.mrb[0].mxu0
        %2560 = vmatprep.mubr.bf16.mxu0 0
        %2561 = vmatmul.mubr.bf16.gmra.mrb[0].mxu0 %v2092
        %v2562 = vpop.f32.mrb[0].mxu0
        %v2563 = vadd.f32 %v2424, %v2562
        %v2564 = vpop.f32.mrb[0].mxu0
        %v2565 = vpop.f32.mrb[0].mxu0
        %v2566 = vadd.f32 %v2425, %v2565
        %v2567 = vpop.f32.mrb[0].mxu0
        %2568 = vmatprep.mubr.bf16.mxu0 0
        %2569 = vmatmul.mubr.bf16.gmra.mrb[0].mxu0 %v2093
        %v2570 = vpop.f32.mrb[0].mxu0
        %v2571 = vadd.f32 %v2426, %v2570
        %v2572 = vpop.f32.mrb[0].mxu0
        %v2573 = vpop.f32.mrb[0].mxu0
        %v2574 = vadd.f32 %v2427, %v2573
        %v2575 = vpop.f32.mrb[0].mxu0
        %2576 = vmatprep.mubr.bf16.mxu0 0
        %2577 = vmatmul.mubr.bf16.gmra.mrb[0].mxu0 %v2094
        %v2578 = vpop.f32.mrb[0].mxu0
        %v2579 = vadd.f32 %v2428, %v2578
        %v2580 = vpop.f32.mrb[0].mxu0
        %v2581 = vpop.f32.mrb[0].mxu0
        %v2582 = vadd.f32 %v2429, %v2581
        %v2583 = vpop.f32.mrb[0].mxu0
        %2584 = vmatprep.mubr.bf16.mxu0 0
        %2585 = vmatmul.mubr.bf16.gmra.mrb[0].mxu0 %v2095
        %v2586 = vpop.f32.mrb[0].mxu0
        %v2587 = vadd.f32 %v2430, %v2586
        %v2588 = vpop.f32.mrb[0].mxu0
        %v2589 = vpop.f32.mrb[0].mxu0
        %v2590 = vadd.f32 %v2431, %v2589
        %v2591 = vpop.f32.mrb[0].mxu0
        %2592 = vdwg.mxu0
        %2593 = vst [vmem:[%s341] sm:$0xff] %v2467
        %2594 = vst [vmem:[%s341 + $0x8] sm:$0xff] %v2470
        %2595 = vst [vmem:[%s341 + $0x10] sm:$0xff] %v2475
        %2596 = vst [vmem:[%s341 + $0x18] sm:$0xff] %v2478
        %2597 = vst [vmem:[%s341 + $0x20] sm:$0xff] %v2483
        %2598 = vst [vmem:[%s341 + $0x28] sm:$0xff] %v2486
        %2599 = vst [vmem:[%s341 + $0x30] sm:$0xff] %v2491
        %2600 = vst [vmem:[%s341 + $0x38] sm:$0xff] %v2494
        %2601 = vst [vmem:[%s341 + $0x40] sm:$0xff] %v2499
        %2602 = vst [vmem:[%s341 + $0x48] sm:$0xff] %v2502
        %2603 = vst [vmem:[%s341 + $0x50] sm:$0xff] %v2507
        %2604 = vst [vmem:[%s341 + $0x58] sm:$0xff] %v2510
        %2605 = vst [vmem:[%s341 + $0x60] sm:$0xff] %v2515
        %2606 = vst [vmem:[%s341 + $0x68] sm:$0xff] %v2518
        %2607 = vst [vmem:[%s341 + $0x70] sm:$0xff] %v2523
        %2608 = vst [vmem:[%s341 + $0x78] sm:$0xff] %v2526
        %2609 = vst [vmem:[%s341 + $0x80] sm:$0xff] %v2531
        %2610 = vst [vmem:[%s341 + $0x88] sm:$0xff] %v2534
        %2611 = vst [vmem:[%s341 + $0x90] sm:$0xff] %v2539
        %2612 = vst [vmem:[%s341 + $0x98] sm:$0xff] %v2542
        %2613 = vst [vmem:[%s341 + $0xa0] sm:$0xff] %v2547
        %2614 = vst [vmem:[%s341 + $0xa8] sm:$0xff] %v2550
        %2615 = vst [vmem:[%s341 + $0xb0] sm:$0xff] %v2555
        %2616 = vst [vmem:[%s341 + $0xb8] sm:$0xff] %v2558
        %2617 = vst [vmem:[%s341 + $0xc0] sm:$0xff] %v2563
        %2618 = vst [vmem:[%s341 + $0xc8] sm:$0xff] %v2566
        %2619 = vst [vmem:[%s341 + $0xd0] sm:$0xff] %v2571
        %2620 = vst [vmem:[%s341 + $0xd8] sm:$0xff] %v2574
        %2621 = vst [vmem:[%s341 + $0xe0] sm:$0xff] %v2579
        %2622 = vst [vmem:[%s341 + $0xe8] sm:$0xff] %v2582
        %2623 = vst [vmem:[%s341 + $0xf0] sm:$0xff] %v2587
        %2624 = vst [vmem:[%s341 + $0xf8] sm:$0xff] %v2590
        %s2625 = sand.u32 %s218, 1
        %s2626 = scalar_lea.sflag [#allocation3], %s2625
        %s2627 = sand.u32 %s218, 1
        %s2628 = smul.addr %s2627, 256
        %s2629 = scalar_lea.vmem [#allocation2], %s2628
        // Predicated region
        $region53: #{tpu_custom_call.1} parent=51 // pred_check
          %p2630 = pneg %p228
        $region54: #{tpu_custom_call.1} parent=51 // pred_check_branch
          %2632 = sbr.rel (%p2630) target = $region56
        $region55: #{tpu_custom_call.1} parent=51 // pred_region
          %s2634 = ssub.s32 4096, 4096
          %2635 = vsyncadd %s2626, %s2634
          %s2636 = smul.addr %s22, 32
          %s2637 = smul.addr %s2636, 128
          %s2638 = scalar_lea.hbm %s8, %s2637
          %s2639 = sshll.u32 %s2629, 4
          %s2640 = int_to_ptr.vmem [resolvable:$true] %s2639
          %2645 = dma.vmem_to_hbm [thread:$0]  %s2640, 4096, %s2638, %s2626, 128, 128, 8
        $region56: #{tpu_custom_call.1} parent=51 // pred_fallthru
          _
      $region52: #{tpu_custom_call.1} parent=5 // pred_fallthru
        _
      %p2646 = scmp.le.s32.totalorder 2, %s17
      // Predicated region
      $region57: #{tpu_custom_call.1} parent=5 // pred_check
        %p2647 = pneg %p2646
      $region58: #{tpu_custom_call.1} parent=5 // pred_check_branch
        %2649 = sbr.rel (%p2647) target = $region60
      $region59: #{tpu_custom_call.1} parent=5 // pred_region
        %s2650 = ssub.s32 %s17, 2
        // Predicated region
        $region61: #{tpu_custom_call.1} parent=59 // pred_check
          %p2651 = pneg %p234
        $region62: #{tpu_custom_call.1} parent=59 // pred_check_branch
          %2653 = sbr.rel (%p2651) target = $region64
        $region63: #{tpu_custom_call.1} parent=59 // pred_region
          %s2654 = sand.u32 %s219, 1
          %s2655 = scalar_lea.sflag [#allocation3], %s2654
          %s2656 = sand.u32 %s219, 1
          %s2657 = smul.addr %s2656, 256
          %s2658 = scalar_lea.vmem [#allocation2], %s2657
          %2659 = dma.done %s2655, 4096
        $region64: #{tpu_custom_call.1} parent=59 // pred_fallthru
          _
      $region60: #{tpu_custom_call.1} parent=5 // pred_fallthru
        _
    $region6: #{tpu_custom_call.1} parent=1 // loop_footer
      %s21 = sadd.s32 1, %s17
    $region7: #{tpu_custom_call.1} parent=1 // loop_footer_branch
      %16 = sbr.rel target = $region3
    $region8: #{tpu_custom_call.1} parent=1 // loop_exit
      _
    %2660 = vsyncpa [#allocation3], 1
    %s2661 = scalar_lea.sflag [#allocation3], 1
    %2662 = vsyncpa %s2661, 1

</llo_original>
